<compile_context>
chip_gen: v7x
topology: tpu7x:2x2x1
jax: 0.10.0
libtpu: 0.0.40
codegen_flags: <defaults>
</compile_context>

<pallas_src>
import functools

import jax
import jax.numpy as jnp
import numpy as np
from jax import lax
from jax.experimental import pallas as pl
from jax.experimental.pallas import tpu as pltpu


def _mf_kernel(uid_ref, mid_ref,          # (1, TB) int32 id blocks (lane-dense)
               ufT_ref, mfT_ref,          # (Faug_pad, n_rows) factor-major tables (VMEM-resident)
               out_ref,                   # (1, TB) lane-dense output block
               *, n_users, n_movies):
    tb = out_ref.shape[-1]

    uid = uid_ref[...]                                    # (1, TB)
    mid = mid_ref[...]                                    # (1, TB)

    # One-hot gather matrices: (n_rows, TB), built entirely on the VPU.
    row_u = lax.broadcasted_iota(jnp.int32, (n_users, tb), 0)
    row_m = lax.broadcasted_iota(jnp.int32, (n_movies, tb), 0)
    onehot_u = (row_u == uid).astype(jnp.float32)          # (n_users, TB)
    onehot_m = (row_m == mid).astype(jnp.float32)          # (n_movies, TB)

    # MXU gathers: factor-major table x one-hot -> (Faug_pad, TB) gathered slabs.
    # precision=HIGHEST keeps the f32 table values exact (one-hot weights are 0/1).
    gu = jnp.dot(ufT_ref[...], onehot_u,
                 preferred_element_type=jnp.float32,
                 precision=lax.Precision.HIGHEST)
    gm = jnp.dot(mfT_ref[...], onehot_m,
                 preferred_element_type=jnp.float32,
                 precision=lax.Precision.HIGHEST)

    # Factor reduction over sublanes; batch stays on lanes -> unmasked (1, TB) store.
    out_ref[...] = jnp.sum(gu * gm, axis=0, keepdims=True)


def matrix_factorization_forward(user_ids, movie_ids,
                                 user_factors, movie_factors,
                                 user_biases, movie_biases,
                                 *, tile_batch=512):
    """Pallas equivalent of MatrixFactorization.forward (returns shape (batch,))."""
    batch = int(user_ids.shape[0])
    n_users, n_factors = user_factors.shape
    n_movies, _ = movie_factors.shape
    dtype = user_factors.dtype

    # Fold biases into the tables:  [uf, ub, 1] . [mf, 1, mb] = sum(uf*mf) + ub + mb.
    # Store factor-major (Faug, n_rows) so gathered slabs keep batch on the lane axis;
    # zero-pad the factor axis to a multiple of 8 (zero rows contribute nothing).
    faug = n_factors + 2
    faug_pad = ((faug + 7) // 8) * 8
    fpad = faug_pad - faug

    uf_aug = jnp.concatenate(
        [user_factors, user_biases, jnp.ones((n_users, 1), dtype)], axis=1)
    mf_aug = jnp.concatenate(
        [movie_factors, jnp.ones((n_movies, 1), dtype), movie_biases], axis=1)
    ufT = jnp.pad(uf_aug, ((0, 0), (0, fpad))).T           # (Faug_pad, n_users)
    mfT = jnp.pad(mf_aug, ((0, 0), (0, fpad))).T           # (Faug_pad, n_movies)

    # Batch tile: multiple of 256 (full MXU lane fill on v6e/v7x; fine on v5e),
    # shrunk toward the batch for small inputs.
    tb = max(256, ((int(tile_batch) + 255) // 256) * 256)
    tb = min(tb, ((batch + 255) // 256) * 256)
    num_tiles = pl.cdiv(batch, tb)
    padded = num_tiles * tb

    # Clip ids (VMEM reads have no runtime bounds check) and pad the tail with id 0;
    # padded outputs are sliced off below.  Lane-dense (1, padded) layout.
    uid = jnp.clip(user_ids.astype(jnp.int32), 0, n_users - 1)
    mid = jnp.clip(movie_ids.astype(jnp.int32), 0, n_movies - 1)
    uid = jnp.pad(uid, (0, padded - batch)).reshape(1, padded)
    mid = jnp.pad(mid, (0, padded - batch)).reshape(1, padded)

    kernel = functools.partial(_mf_kernel, n_users=n_users, n_movies=n_movies)

    out = pl.pallas_call(
        kernel,
        out_shape=jax.ShapeDtypeStruct((1, padded), jnp.float32),
        grid=(num_tiles,),
        in_specs=[
            pl.BlockSpec((1, tb), lambda t: (0, t)),                  # user ids
            pl.BlockSpec((1, tb), lambda t: (0, t)),                  # movie ids
            # Whole (small) tables VMEM-resident; constant block index -> fetched once.
            pl.BlockSpec((faug_pad, n_users), lambda t: (0, 0)),
            pl.BlockSpec((faug_pad, n_movies), lambda t: (0, 0)),
        ],
        out_specs=pl.BlockSpec((1, tb), lambda t: (0, t)),
        compiler_params=pltpu.CompilerParams(
            dimension_semantics=("parallel",),     # batch tiles independent (2 TCs on v7x)
            vmem_limit_bytes=32 * 1024 * 1024),
    )(uid, mid, ufT, mfT)

    # (1, padded) -> (batch,): drop padding; matches `prediction.squeeze()`.
    return out.reshape(padded)[:batch]


def _reference_forward(user_ids, movie_ids, uf, mf, ub, mb):
    ue = uf[user_ids]                       # (B, F)
    me = mf[movie_ids]                      # (B, F)
    pred = jnp.sum(ue * me, axis=1, keepdims=True) + ub[user_ids] + mb[movie_ids]
    return jnp.squeeze(pred, axis=1)


if __name__ == "__main__":
    n_users, n_movies, n_factors = 64, 96, 32

    key = jax.random.PRNGKey(0)
    k_uf, k_mf, k_ub, k_mb, k_u, k_m = jax.random.split(key, 6)

    # nn.Embedding default init: N(0, 1).
    user_factors = jax.random.normal(k_uf, (n_users, n_factors), dtype=jnp.float32)
    movie_factors = jax.random.normal(k_mf, (n_movies, n_factors), dtype=jnp.float32)
    user_biases = jax.random.normal(k_ub, (n_users, 1), dtype=jnp.float32)
    movie_biases = jax.random.normal(k_mb, (n_movies, 1), dtype=jnp.float32)

    # Exercise the single-tile path, the padded-tail path, and the multi-tile path.
    for batch in (8, 300, 600):
        k_u, k_uid = jax.random.split(k_u)
        k_m, k_mid = jax.random.split(k_m)
        user_ids = jax.random.randint(k_uid, (batch,), 0, n_users, dtype=jnp.int32)
        movie_ids = jax.random.randint(k_mid, (batch,), 0, n_movies, dtype=jnp.int32)

        out = matrix_factorization_forward(
            user_ids, movie_ids, user_factors, movie_factors,
            user_biases, movie_biases)
        out = jax.block_until_ready(out)

        ref = _reference_forward(
            user_ids, movie_ids, user_factors, movie_factors,
            user_biases, movie_biases)
        np.testing.assert_allclose(np.asarray(out), np.asarray(ref),
                                   rtol=1e-5, atol=1e-5)

    print("KERNEL_OK")
</pallas_src>

<mosaic_0001>
module attributes {stable_mosaic.version = 11 : i64} {
  func.func @_mf_kernel(%arg0: i32, %arg1: memref<1x256xi32, #tpu.memory_space<vmem>>, %arg2: memref<1x256xi32, #tpu.memory_space<vmem>>, %arg3: memref<40x64xf32, #tpu.memory_space<vmem>>, %arg4: memref<40x96xf32, #tpu.memory_space<vmem>>, %arg5: memref<1x256xf32, #tpu.memory_space<vmem>>) attributes {dimension_semantics = [#tpu.dimension_semantics<parallel>], iteration_bounds = array<i64: 1>, scalar_prefetch = 0 : i64, scratch_operands = 0 : i64, tpu.core_type = #tpu.core_type<tc>, window_params = [{transform_indices = @transform_0, window_bounds = array<i64: 1, 256>}, {transform_indices = @transform_1, window_bounds = array<i64: 1, 256>}, {pipeline_mode = #tpu.pipeline_mode<synchronous>, transform_indices = @transform_2, window_bounds = array<i64: 40, 64>}, {pipeline_mode = #tpu.pipeline_mode<synchronous>, transform_indices = @transform_3, window_bounds = array<i64: 40, 96>}, {transform_indices = @transform_4, window_bounds = array<i64: 1, 256>}]} {
    %c0 = arith.constant 0 : index
    %c0_0 = arith.constant 0 : index
    %0 = vector.load %arg1[%c0, %c0_0] : memref<1x256xi32, #tpu.memory_space<vmem>>, vector<1x256xi32>
    %c0_1 = arith.constant 0 : index
    %c0_2 = arith.constant 0 : index
    %1 = vector.load %arg2[%c0_1, %c0_2] : memref<1x256xi32, #tpu.memory_space<vmem>>, vector<1x256xi32>
    %2 = tpu.iota {dimensions = array<i32: 0>} : vector<64x256xi32>
    %3 = tpu.iota {dimensions = array<i32: 0>} : vector<96x256xi32>
    %4 = vector.broadcast %0 : vector<1x256xi32> to vector<64x256xi32>
    %5 = arith.cmpi eq, %2, %4 : vector<64x256xi32>
    %6 = arith.extui %5 : vector<64x256xi1> to vector<64x256xi32>
    %7 = arith.sitofp %6 : vector<64x256xi32> to vector<64x256xf32>
    %8 = vector.broadcast %1 : vector<1x256xi32> to vector<96x256xi32>
    %9 = arith.cmpi eq, %3, %8 : vector<96x256xi32>
    %10 = arith.extui %9 : vector<96x256xi1> to vector<96x256xi32>
    %11 = arith.sitofp %10 : vector<96x256xi32> to vector<96x256xf32>
    %c0_3 = arith.constant 0 : index
    %c0_4 = arith.constant 0 : index
    %12 = vector.load %arg3[%c0_3, %c0_4] : memref<40x64xf32, #tpu.memory_space<vmem>>, vector<40x64xf32>
    %cst = arith.constant dense<0.000000e+00> : vector<40x256xf32>
    %13 = tpu.matmul %12, %7, %cst {dimension_numbers = #tpu.dot_dimension_numbers<[1], [0], [0], [1], [0, 0, 1, 1], [], []>, precision = #tpu.contract_precision<fp32>} : vector<40x64xf32>, vector<64x256xf32>, vector<40x256xf32> -> vector<40x256xf32>
    %c0_5 = arith.constant 0 : index
    %c0_6 = arith.constant 0 : index
    %14 = vector.load %arg4[%c0_5, %c0_6] : memref<40x96xf32, #tpu.memory_space<vmem>>, vector<40x96xf32>
    %cst_7 = arith.constant dense<0.000000e+00> : vector<40x256xf32>
    %15 = tpu.matmul %14, %11, %cst_7 {dimension_numbers = #tpu.dot_dimension_numbers<[1], [0], [0], [1], [0, 0, 1, 1], [], []>, precision = #tpu.contract_precision<fp32>} : vector<40x96xf32>, vector<96x256xf32>, vector<40x256xf32> -> vector<40x256xf32>
    %16 = arith.mulf %13, %15 : vector<40x256xf32>
    %cst_8 = arith.constant dense<0.000000e+00> : vector<256xf32>
    %17 = vector.multi_reduction <add>, %16, %cst_8 [0] : vector<40x256xf32> to vector<256xf32>
    %18 = vector.shape_cast %17 : vector<256xf32> to vector<1x256xf32>
    %c0_9 = arith.constant 0 : index
    %c0_10 = arith.constant 0 : index
    %19 = vector.load %arg5[%c0_9, %c0_10] : memref<1x256xf32, #tpu.memory_space<vmem>>, vector<1x256xf32>
    tpu.vector_store %arg5[%c0_9, %c0_10], %18 {strides = array<i32>} : memref<1x256xf32, #tpu.memory_space<vmem>>, vector<1x256xf32>,
    return
  }
  func.func @transform_0(%arg0: i32) -> (i32, i32) {
    %c0_i32 = arith.constant 0 : i32
    %c0_i32_0 = arith.constant 0 : i32
    return %c0_i32, %arg0 : i32, i32
  }
  func.func @transform_1(%arg0: i32) -> (i32, i32) {
    %c0_i32 = arith.constant 0 : i32
    %c0_i32_0 = arith.constant 0 : i32
    return %c0_i32, %arg0 : i32, i32
  }
  func.func @transform_2(%arg0: i32) -> (i32, i32) {
    %c0_i32 = arith.constant 0 : i32
    %c0_i32_0 = arith.constant 0 : i32
    %c0_i32_1 = arith.constant 0 : i32
    return %c0_i32, %c0_i32_0 : i32, i32
  }
  func.func @transform_3(%arg0: i32) -> (i32, i32) {
    %c0_i32 = arith.constant 0 : i32
    %c0_i32_0 = arith.constant 0 : i32
    %c0_i32_1 = arith.constant 0 : i32
    return %c0_i32, %c0_i32_0 : i32, i32
  }
  func.func @transform_4(%arg0: i32) -> (i32, i32) {
    %c0_i32 = arith.constant 0 : i32
    %c0_i32_0 = arith.constant 0 : i32
    return %c0_i32, %arg0 : i32, i32
  }
}

</mosaic_0001>

<llo_original>
// kernel: tpu_custom_call.1
$region0: #{tpu_custom_call.1}
  #allocation0 [shape = 'u32[]', space=smem, size = 0x4, offset = 0x4, fixed_abs, tag = 'smem constant byte address 0x4 - core index']
  #allocation1 [shape = 'u32[144,128]{1,0:T(1,128)}', space=vmem, size = 0x12000, scoped, tag = 'internal scratch']
  %s0 = inlined_call_operand.hbm [shape: s32[1,256], index: 0, kind: input, shape index: {}]
  %s1 = inlined_call_operand.vmem [shape: s32[1,256], index: 1, kind: input, shape index: {}]
  %s2 = inlined_call_operand.hbm [shape: f32[40,64], index: 2, kind: input, shape index: {}]
  %s3 = inlined_call_operand.hbm [shape: f32[40,96], index: 3, kind: input, shape index: {}]
  %s4 = inlined_call_operand.hbm [shape: f32[1,256], index: 4, kind: output, shape index: {}]
  %s5 = sld [smem:[#allocation0]]
  $region38: #{tpu_custom_call.1} parent=0
    _
  %s7 = ssub.s32 1, %s5
  %s8 = scalar_select 0, %s7, %s5
  $region1: #{tpu_custom_call.1} parent=0
    #allocation2 [shape = 'u8[1024]{0}', space=vmem, size = 0x400, scoped, tag = 'input window, operand 0, single buffered']
    #allocation3 [shape = 's32[1]{0}', space=sflag, size = 0x4, scoped, tag = 'scoped memory for tpu_custom_call.1']
    #allocation4 [shape = 's32[1]{0}', space=sflag, size = 0x4, scoped, tag = 'scoped memory for tpu_custom_call.1']
    #allocation5 [shape = 'u8[20480]{0}', space=vmem, size = 0x5000, scoped, tag = 'input window, operand 2, single buffered']
    #allocation6 [shape = 's32[1]{0}', space=sflag, size = 0x4, scoped, tag = 'scoped memory for tpu_custom_call.1']
    #allocation7 [shape = 'u8[20480]{0}', space=vmem, size = 0x5000, scoped, tag = 'input window, operand 3, single buffered']
    #allocation8 [shape = 'u8[1024]{0}', space=vmem, size = 0x400, scoped, tag = 'output window, operand 0, single buffered']
    %9 = vsyncpa [#allocation3], 0
    %10 = vsyncpa [#allocation6], 0
    %11 = vsyncpa [#allocation4], 0
    // Predicated region
    $region2: #{tpu_custom_call.1} parent=1 // pred_check
      _
    $region3: #{tpu_custom_call.1} parent=1 // pred_check_branch
      %13 = sbr.rel (0) target = $region5
    $region4: #{tpu_custom_call.1} parent=1 // pred_region
      %s15 = ssub.s32 32, 32
      %16 = vsyncadd [#allocation3], %s15
      %s18 = sshll.u32 [#allocation2], 4
      %s19 = int_to_ptr.vmem [resolvable:$true] %s18
      %21 = dma.hbm_to_vmem [thread:$0]  %s0, 32, %s19, [#allocation3]
    $region5: #{tpu_custom_call.1} parent=1 // pred_fallthru
      _
    // Predicated region
    $region6: #{tpu_custom_call.1} parent=1 // pred_check
      _
    $region7: #{tpu_custom_call.1} parent=1 // pred_check_branch
      %23 = sbr.rel (0) target = $region9
    $region8: #{tpu_custom_call.1} parent=1 // pred_region
      _
    $region9: #{tpu_custom_call.1} parent=1 // pred_fallthru
      _
    // Predicated region
    $region10: #{tpu_custom_call.1} parent=1 // pred_check
      _
    $region11: #{tpu_custom_call.1} parent=1 // pred_check_branch
      %25 = sbr.rel (0) target = $region13
    $region12: #{tpu_custom_call.1} parent=1 // pred_region
      %s27 = ssub.s32 640, 640
      %28 = vsyncadd [#allocation6], %s27
      %s29 = sshll.u32 [#allocation5], 4
      %s30 = int_to_ptr.vmem [resolvable:$true] %s29
      %35 = dma.hbm_to_vmem [thread:$0]  %s2, 640, %s30, [#allocation6], 128, 128, 8
    $region13: #{tpu_custom_call.1} parent=1 // pred_fallthru
      _
    // Predicated region
    $region14: #{tpu_custom_call.1} parent=1 // pred_check
      _
    $region15: #{tpu_custom_call.1} parent=1 // pred_check_branch
      %37 = sbr.rel (0) target = $region17
    $region16: #{tpu_custom_call.1} parent=1 // pred_region
      %s39 = ssub.s32 640, 640
      %40 = vsyncadd [#allocation6], %s39
      %s41 = sshll.u32 [#allocation7], 4
      %s42 = int_to_ptr.vmem [resolvable:$true] %s41
      %47 = dma.hbm_to_vmem [thread:$0]  %s3, 640, %s42, [#allocation6], 128, 128, 8
    $region17: #{tpu_custom_call.1} parent=1 // pred_fallthru
      _
    // Predicated region
    $region18: #{tpu_custom_call.1} parent=1 // pred_check
      _
    $region19: #{tpu_custom_call.1} parent=1 // pred_check_branch
      %49 = sbr.rel (0) target = $region21
    $region20: #{tpu_custom_call.1} parent=1 // pred_region
      %50 = dma.done [#allocation3], 32
    $region21: #{tpu_custom_call.1} parent=1 // pred_fallthru
      _
    // Predicated region
    $region22: #{tpu_custom_call.1} parent=1 // pred_check
      _
    $region23: #{tpu_custom_call.1} parent=1 // pred_check_branch
      %52 = sbr.rel (0) target = $region25
    $region24: #{tpu_custom_call.1} parent=1 // pred_region
      %53 = dma.done [#allocation6], 640
    $region25: #{tpu_custom_call.1} parent=1 // pred_fallthru
      _
    // Predicated region
    $region26: #{tpu_custom_call.1} parent=1 // pred_check
      _
    $region27: #{tpu_custom_call.1} parent=1 // pred_check_branch
      %55 = sbr.rel (0) target = $region29
    $region28: #{tpu_custom_call.1} parent=1 // pred_region
      %56 = dma.done [#allocation6], 640
    $region29: #{tpu_custom_call.1} parent=1 // pred_fallthru
      _
    %v57 = vld [vmem:[#allocation2] sm:$0x3]
    %v58 = vld [vmem:[%s1] sm:$0x3]
    %v59 = vlaneseq
    %v60 = vshrl.u32 %v59, 7
    %v61 = vadd.s32 %v60, 8
    %v62 = vadd.s32 %v60, 16
    %v63 = vadd.s32 %v60, 24
    %v64 = vadd.s32 %v60, 32
    %v65 = vadd.s32 %v60, 40
    %v66 = vadd.s32 %v60, 48
    %v67 = vadd.s32 %v60, 56
    %v68 = vadd.s32 %v60, 64
    %v69 = vadd.s32 %v60, 72
    %v70 = vadd.s32 %v60, 80
    %v71 = vadd.s32 %v60, 88
    %v72 = vlaneseq
    %v73 = vshrl.u32 %v72, 7
    %v74 = vsub.s32 0, %v73
    %v75 = vrot.slane %v57, %v74
    %v76 = vlaneseq
    %v77 = vshrl.u32 %v76, 7
    %v78 = vsub.s32 1, %v77
    %v79 = vrot.slane %v57, %v78
    %vm80 = vcmp.eq.s32.totalorder %v60, %v75
    %vm81 = vcmp.eq.s32.totalorder %v60, %v79
    %vm82 = vcmp.eq.s32.totalorder %v61, %v75
    %vm83 = vcmp.eq.s32.totalorder %v61, %v79
    %vm84 = vcmp.eq.s32.totalorder %v62, %v75
    %vm85 = vcmp.eq.s32.totalorder %v62, %v79
    %vm86 = vcmp.eq.s32.totalorder %v63, %v75
    %vm87 = vcmp.eq.s32.totalorder %v63, %v79
    %vm88 = vcmp.eq.s32.totalorder %v64, %v75
    %vm89 = vcmp.eq.s32.totalorder %v64, %v79
    %vm90 = vcmp.eq.s32.totalorder %v65, %v75
    %vm91 = vcmp.eq.s32.totalorder %v65, %v79
    %vm92 = vcmp.eq.s32.totalorder %v66, %v75
    %vm93 = vcmp.eq.s32.totalorder %v66, %v79
    %vm94 = vcmp.eq.s32.totalorder %v67, %v75
    %vm95 = vcmp.eq.s32.totalorder %v67, %v79
    %v96 = vsel %vm80, 1, 0
    %v97 = vsel %vm81, 1, 0
    %v98 = vsel %vm82, 1, 0
    %v99 = vsel %vm83, 1, 0
    %v100 = vsel %vm84, 1, 0
    %v101 = vsel %vm85, 1, 0
    %v102 = vsel %vm86, 1, 0
    %v103 = vsel %vm87, 1, 0
    %v104 = vsel %vm88, 1, 0
    %v105 = vsel %vm89, 1, 0
    %v106 = vsel %vm90, 1, 0
    %v107 = vsel %vm91, 1, 0
    %v108 = vsel %vm92, 1, 0
    %v109 = vsel %vm93, 1, 0
    %v110 = vsel %vm94, 1, 0
    %v111 = vsel %vm95, 1, 0
    %v112 = vcvt.s32.f32 %v96
    %v113 = vcvt.s32.f32 %v97
    %v114 = vcvt.s32.f32 %v98
    %v115 = vcvt.s32.f32 %v99
    %v116 = vcvt.s32.f32 %v100
    %v117 = vcvt.s32.f32 %v101
    %v118 = vcvt.s32.f32 %v102
    %v119 = vcvt.s32.f32 %v103
    %v120 = vcvt.s32.f32 %v104
    %v121 = vcvt.s32.f32 %v105
    %v122 = vcvt.s32.f32 %v106
    %v123 = vcvt.s32.f32 %v107
    %v124 = vcvt.s32.f32 %v108
    %v125 = vcvt.s32.f32 %v109
    %v126 = vcvt.s32.f32 %v110
    %v127 = vcvt.s32.f32 %v111
    %v128 = vlaneseq
    %v129 = vshrl.u32 %v128, 7
    %v130 = vsub.s32 0, %v129
    %v131 = vrot.slane %v58, %v130
    %v132 = vlaneseq
    %v133 = vshrl.u32 %v132, 7
    %v134 = vsub.s32 1, %v133
    %v135 = vrot.slane %v58, %v134
    %vm136 = vcmp.eq.s32.totalorder %v60, %v131
    %vm137 = vcmp.eq.s32.totalorder %v60, %v135
    %vm138 = vcmp.eq.s32.totalorder %v61, %v131
    %vm139 = vcmp.eq.s32.totalorder %v61, %v135
    %vm140 = vcmp.eq.s32.totalorder %v62, %v131
    %vm141 = vcmp.eq.s32.totalorder %v62, %v135
    %vm142 = vcmp.eq.s32.totalorder %v63, %v131
    %vm143 = vcmp.eq.s32.totalorder %v63, %v135
    %vm144 = vcmp.eq.s32.totalorder %v64, %v131
    %vm145 = vcmp.eq.s32.totalorder %v64, %v135
    %vm146 = vcmp.eq.s32.totalorder %v65, %v131
    %vm147 = vcmp.eq.s32.totalorder %v65, %v135
    %vm148 = vcmp.eq.s32.totalorder %v66, %v131
    %vm149 = vcmp.eq.s32.totalorder %v66, %v135
    %vm150 = vcmp.eq.s32.totalorder %v67, %v131
    %vm151 = vcmp.eq.s32.totalorder %v67, %v135
    %vm152 = vcmp.eq.s32.totalorder %v68, %v131
    %vm153 = vcmp.eq.s32.totalorder %v68, %v135
    %vm154 = vcmp.eq.s32.totalorder %v69, %v131
    %vm155 = vcmp.eq.s32.totalorder %v69, %v135
    %vm156 = vcmp.eq.s32.totalorder %v70, %v131
    %vm157 = vcmp.eq.s32.totalorder %v70, %v135
    %vm158 = vcmp.eq.s32.totalorder %v71, %v131
    %vm159 = vcmp.eq.s32.totalorder %v71, %v135
    %v160 = vsel %vm136, 1, 0
    %v161 = vsel %vm137, 1, 0
    %v162 = vsel %vm138, 1, 0
    %v163 = vsel %vm139, 1, 0
    %v164 = vsel %vm140, 1, 0
    %v165 = vsel %vm141, 1, 0
    %v166 = vsel %vm142, 1, 0
    %v167 = vsel %vm143, 1, 0
    %v168 = vsel %vm144, 1, 0
    %v169 = vsel %vm145, 1, 0
    %v170 = vsel %vm146, 1, 0
    %v171 = vsel %vm147, 1, 0
    %v172 = vsel %vm148, 1, 0
    %v173 = vsel %vm149, 1, 0
    %v174 = vsel %vm150, 1, 0
    %v175 = vsel %vm151, 1, 0
    %v176 = vsel %vm152, 1, 0
    %v177 = vsel %vm153, 1, 0
    %v178 = vsel %vm154, 1, 0
    %v179 = vsel %vm155, 1, 0
    %v180 = vsel %vm156, 1, 0
    %v181 = vsel %vm157, 1, 0
    %v182 = vsel %vm158, 1, 0
    %v183 = vsel %vm159, 1, 0
    %v184 = vcvt.s32.f32 %v160
    %v185 = vcvt.s32.f32 %v161
    %v186 = vcvt.s32.f32 %v162
    %v187 = vcvt.s32.f32 %v163
    %v188 = vcvt.s32.f32 %v164
    %v189 = vcvt.s32.f32 %v165
    %v190 = vcvt.s32.f32 %v166
    %v191 = vcvt.s32.f32 %v167
    %v192 = vcvt.s32.f32 %v168
    %v193 = vcvt.s32.f32 %v169
    %v194 = vcvt.s32.f32 %v170
    %v195 = vcvt.s32.f32 %v171
    %v196 = vcvt.s32.f32 %v172
    %v197 = vcvt.s32.f32 %v173
    %v198 = vcvt.s32.f32 %v174
    %v199 = vcvt.s32.f32 %v175
    %v200 = vcvt.s32.f32 %v176
    %v201 = vcvt.s32.f32 %v177
    %v202 = vcvt.s32.f32 %v178
    %v203 = vcvt.s32.f32 %v179
    %v204 = vcvt.s32.f32 %v180
    %v205 = vcvt.s32.f32 %v181
    %v206 = vcvt.s32.f32 %v182
    %v207 = vcvt.s32.f32 %v183
    %v208 = vld [vmem:[#allocation5] sm:$0xff]
    %v209 = vld [vmem:[#allocation5 + $0x8] sm:$0xff]
    %v210 = vld [vmem:[#allocation5 + $0x10] sm:$0xff]
    %v211 = vld [vmem:[#allocation5 + $0x18] sm:$0xff]
    %v212 = vld [vmem:[#allocation5 + $0x20] sm:$0xff]
    %vm213 = vcmask 523264
    %v215 = vsel %vm213, %v208, 0
    %v218 = vsel %vm213, %v209, 0
    %v221 = vsel %vm213, %v210, 0
    %v224 = vsel %vm213, %v211, 0
    %v227 = vsel %vm213, %v212, 0
    %v229 = vand.u32 %v113, 4294901760
    %230 = vmatprep.subr.mxu0 %v229
    %v231 = vand.u32 %v112, 4294901760
    %232 = vmatpush1.msra.mxu0 %v231
    %v233 = vand.u32 %v115, 4294901760
    %234 = vmatprep.subr.mxu0 %v233
    %v235 = vand.u32 %v114, 4294901760
    %236 = vmatpush1.msra.mxu0 %v235
    %v237 = vand.u32 %v117, 4294901760
    %238 = vmatprep.subr.mxu0 %v237
    %v239 = vand.u32 %v116, 4294901760
    %240 = vmatpush1.msra.mxu0 %v239
    %v241 = vand.u32 %v119, 4294901760
    %242 = vmatprep.subr.mxu0 %v241
    %v243 = vand.u32 %v118, 4294901760
    %244 = vmatpush1.msra.mxu0 %v243
    %v245 = vand.u32 %v121, 4294901760
    %246 = vmatprep.subr.mxu0 %v245
    %v247 = vand.u32 %v120, 4294901760
    %248 = vmatpush1.msra.mxu0 %v247
    %v249 = vand.u32 %v123, 4294901760
    %250 = vmatprep.subr.mxu0 %v249
    %v251 = vand.u32 %v122, 4294901760
    %252 = vmatpush1.msra.mxu0 %v251
    %v253 = vand.u32 %v125, 4294901760
    %254 = vmatprep.subr.mxu0 %v253
    %v255 = vand.u32 %v124, 4294901760
    %256 = vmatpush1.msra.mxu0 %v255
    %v257 = vand.u32 %v127, 4294901760
    %258 = vmatprep.subr.mxu0 %v257
    %v259 = vand.u32 %v126, 4294901760
    %260 = vmatpush1.msra.mxu0 %v259
    %261 = vmatprep.subr.mxu0 0.0
    %262 = vmatpush1.msra.mxu0 0.0
    %263 = vmatprep.subr.mxu0 0.0
    %264 = vmatpush1.msra.mxu0 0.0
    %265 = vmatprep.subr.mxu0 0.0
    %266 = vmatpush1.msra.mxu0 0.0
    %267 = vmatprep.subr.mxu0 0.0
    %268 = vmatpush1.msra.mxu0 0.0
    %269 = vmatprep.subr.mxu0 0.0
    %270 = vmatpush1.msra.mxu0 0.0
    %271 = vmatprep.subr.mxu0 0.0
    %272 = vmatpush1.msra.mxu0 0.0
    %273 = vmatprep.subr.mxu0 0.0
    %274 = vmatpush1.msra.mxu0 0.0
    %275 = vmatprep.subr.mxu0 0.0
    %276 = vmatpush1.msra.mxu0 0.0
    %277 = vmatprep.subr.mxu0 0.0
    %278 = vmatpush1.msra.mxu0 0.0
    %279 = vmatprep.subr.mxu0 0.0
    %280 = vmatpush1.msra.mxu0 0.0
    %281 = vmatprep.subr.mxu0 0.0
    %282 = vmatpush1.msra.mxu0 0.0
    %283 = vmatprep.subr.mxu0 0.0
    %284 = vmatpush1.msra.mxu0 0.0
    %285 = vmatprep.subr.mxu0 0.0
    %286 = vmatpush1.msra.mxu0 0.0
    %287 = vmatprep.subr.mxu0 0.0
    %288 = vmatpush1.msra.mxu0 0.0
    %289 = vmatprep.subr.mxu0 0.0
    %290 = vmatpush1.msra.mxu0 0.0
    %291 = vmatprep.subr.mxu0 0.0
    %292 = vmatpush1.msra.mxu0 0.0
    %293 = vmatprep.subr.mxu0 0.0
    %294 = vmatpush1.msra.mxu0 0.0
    %295 = vmatprep.subr.mxu0 0.0
    %296 = vmatpush1.msra.mxu0 0.0
    %297 = vmatprep.subr.mxu0 0.0
    %298 = vmatpush1.msra.mxu0 0.0
    %299 = vmatprep.subr.mxu0 0.0
    %300 = vmatpush1.msra.mxu0 0.0
    %301 = vmatprep.subr.mxu0 0.0
    %302 = vmatpush1.msra.mxu0 0.0
    %303 = vmatprep.subr.mxu0 0.0
    %304 = vmatpush1.msra.mxu0 0.0
    %305 = vmatprep.subr.mxu0 0.0
    %306 = vmatpush1.msra.mxu0 0.0
    %307 = vmatprep.subr.mxu0 0.0
    %308 = vmatpush1.msra.mxu0 0.0
    %309 = vmatprep.mubr.f32.mxu0 0.0
    %v310 = vand.u32 %v215, 4294901760
    %v311 = vsub.f32 %v215, %v310
    %v312 = vand.u32 %v311, 4294901760
    %v313 = vsub.f32 %v311, %v312
    %v314 = vand.u32 %v313, 4294901760
    %315 = vmatmul.mubr.f32.gmra.mrb[0].mxu0 %v314
    %v316 = vpop.f32.mrb[0].mxu0
    %v317 = vadd.f32 0.0, %v316
    %v318 = vpop.f32.mrb[0].mxu0
    %v319 = vadd.f32 0.0, %v318
    %320 = vmatprep.mubr.f32.mxu0 0.0
    %v321 = vand.u32 %v218, 4294901760
    %v322 = vsub.f32 %v218, %v321
    %v323 = vand.u32 %v322, 4294901760
    %v324 = vsub.f32 %v322, %v323
    %v325 = vand.u32 %v324, 4294901760
    %326 = vmatmul.mubr.f32.gmra.mrb[0].mxu0 %v325
    %v327 = vpop.f32.mrb[0].mxu0
    %v328 = vadd.f32 0.0, %v327
    %v329 = vpop.f32.mrb[0].mxu0
    %v330 = vadd.f32 0.0, %v329
    %331 = vmatprep.mubr.f32.mxu0 0.0
    %v332 = vand.u32 %v221, 4294901760
    %v333 = vsub.f32 %v221, %v332
    %v334 = vand.u32 %v333, 4294901760
    %v335 = vsub.f32 %v333, %v334
    %v336 = vand.u32 %v335, 4294901760
    %337 = vmatmul.mubr.f32.gmra.mrb[0].mxu0 %v336
    %v338 = vpop.f32.mrb[0].mxu0
    %v339 = vadd.f32 0.0, %v338
    %v340 = vpop.f32.mrb[0].mxu0
    %v341 = vadd.f32 0.0, %v340
    %342 = vmatprep.mubr.f32.mxu0 0.0
    %v343 = vand.u32 %v224, 4294901760
    %v344 = vsub.f32 %v224, %v343
    %v345 = vand.u32 %v344, 4294901760
    %v346 = vsub.f32 %v344, %v345
    %v347 = vand.u32 %v346, 4294901760
    %348 = vmatmul.mubr.f32.gmra.mrb[0].mxu0 %v347
    %v349 = vpop.f32.mrb[0].mxu0
    %v350 = vadd.f32 0.0, %v349
    %v351 = vpop.f32.mrb[0].mxu0
    %v352 = vadd.f32 0.0, %v351
    %353 = vmatprep.mubr.f32.mxu0 0.0
    %v354 = vand.u32 %v227, 4294901760
    %v355 = vsub.f32 %v227, %v354
    %v356 = vand.u32 %v355, 4294901760
    %v357 = vsub.f32 %v355, %v356
    %v358 = vand.u32 %v357, 4294901760
    %359 = vmatmul.mubr.f32.gmra.mrb[0].mxu0 %v358
    %v360 = vpop.f32.mrb[0].mxu0
    %v361 = vadd.f32 0.0, %v360
    %v362 = vpop.f32.mrb[0].mxu0
    %v363 = vadd.f32 0.0, %v362
    %364 = vdwg.mxu0
    %v365 = vand.u32 %v113, 4294901760
    %v366 = vsub.f32 %v113, %v365
    %v367 = vand.u32 %v366, 4294901760
    %v368 = vsub.f32 %v366, %v367
    %v369 = vand.u32 %v368, 4294901760
    %370 = vmatprep.subr.mxu0 %v369
    %v371 = vand.u32 %v112, 4294901760
    %v372 = vsub.f32 %v112, %v371
    %v373 = vand.u32 %v372, 4294901760
    %v374 = vsub.f32 %v372, %v373
    %v375 = vand.u32 %v374, 4294901760
    %376 = vmatpush1.msra.mxu0 %v375
    %v377 = vand.u32 %v115, 4294901760
    %v378 = vsub.f32 %v115, %v377
    %v379 = vand.u32 %v378, 4294901760
    %v380 = vsub.f32 %v378, %v379
    %v381 = vand.u32 %v380, 4294901760
    %382 = vmatprep.subr.mxu0 %v381
    %v383 = vand.u32 %v114, 4294901760
    %v384 = vsub.f32 %v114, %v383
    %v385 = vand.u32 %v384, 4294901760
    %v386 = vsub.f32 %v384, %v385
    %v387 = vand.u32 %v386, 4294901760
    %388 = vmatpush1.msra.mxu0 %v387
    %v389 = vand.u32 %v117, 4294901760
    %v390 = vsub.f32 %v117, %v389
    %v391 = vand.u32 %v390, 4294901760
    %v392 = vsub.f32 %v390, %v391
    %v393 = vand.u32 %v392, 4294901760
    %394 = vmatprep.subr.mxu0 %v393
    %v395 = vand.u32 %v116, 4294901760
    %v396 = vsub.f32 %v116, %v395
    %v397 = vand.u32 %v396, 4294901760
    %v398 = vsub.f32 %v396, %v397
    %v399 = vand.u32 %v398, 4294901760
    %400 = vmatpush1.msra.mxu0 %v399
    %v401 = vand.u32 %v119, 4294901760
    %v402 = vsub.f32 %v119, %v401
    %v403 = vand.u32 %v402, 4294901760
    %v404 = vsub.f32 %v402, %v403
    %v405 = vand.u32 %v404, 4294901760
    %406 = vmatprep.subr.mxu0 %v405
    %v407 = vand.u32 %v118, 4294901760
    %v408 = vsub.f32 %v118, %v407
    %v409 = vand.u32 %v408, 4294901760
    %v410 = vsub.f32 %v408, %v409
    %v411 = vand.u32 %v410, 4294901760
    %412 = vmatpush1.msra.mxu0 %v411
    %v413 = vand.u32 %v121, 4294901760
    %v414 = vsub.f32 %v121, %v413
    %v415 = vand.u32 %v414, 4294901760
    %v416 = vsub.f32 %v414, %v415
    %v417 = vand.u32 %v416, 4294901760
    %418 = vmatprep.subr.mxu0 %v417
    %v419 = vand.u32 %v120, 4294901760
    %v420 = vsub.f32 %v120, %v419
    %v421 = vand.u32 %v420, 4294901760
    %v422 = vsub.f32 %v420, %v421
    %v423 = vand.u32 %v422, 4294901760
    %424 = vmatpush1.msra.mxu0 %v423
    %v425 = vand.u32 %v123, 4294901760
    %v426 = vsub.f32 %v123, %v425
    %v427 = vand.u32 %v426, 4294901760
    %v428 = vsub.f32 %v426, %v427
    %v429 = vand.u32 %v428, 4294901760
    %430 = vmatprep.subr.mxu0 %v429
    %v431 = vand.u32 %v122, 4294901760
    %v432 = vsub.f32 %v122, %v431
    %v433 = vand.u32 %v432, 4294901760
    %v434 = vsub.f32 %v432, %v433
    %v435 = vand.u32 %v434, 4294901760
    %436 = vmatpush1.msra.mxu0 %v435
    %v437 = vand.u32 %v125, 4294901760
    %v438 = vsub.f32 %v125, %v437
    %v439 = vand.u32 %v438, 4294901760
    %v440 = vsub.f32 %v438, %v439
    %v441 = vand.u32 %v440, 4294901760
    %442 = vmatprep.subr.mxu0 %v441
    %v443 = vand.u32 %v124, 4294901760
    %v444 = vsub.f32 %v124, %v443
    %v445 = vand.u32 %v444, 4294901760
    %v446 = vsub.f32 %v444, %v445
    %v447 = vand.u32 %v446, 4294901760
    %448 = vmatpush1.msra.mxu0 %v447
    %v449 = vand.u32 %v127, 4294901760
    %v450 = vsub.f32 %v127, %v449
    %v451 = vand.u32 %v450, 4294901760
    %v452 = vsub.f32 %v450, %v451
    %v453 = vand.u32 %v452, 4294901760
    %454 = vmatprep.subr.mxu0 %v453
    %v455 = vand.u32 %v126, 4294901760
    %v456 = vsub.f32 %v126, %v455
    %v457 = vand.u32 %v456, 4294901760
    %v458 = vsub.f32 %v456, %v457
    %v459 = vand.u32 %v458, 4294901760
    %460 = vmatpush1.msra.mxu0 %v459
    %461 = vmatprep.subr.mxu0 0.0
    %462 = vmatpush1.msra.mxu0 0.0
    %463 = vmatprep.subr.mxu0 0.0
    %464 = vmatpush1.msra.mxu0 0.0
    %465 = vmatprep.subr.mxu0 0.0
    %466 = vmatpush1.msra.mxu0 0.0
    %467 = vmatprep.subr.mxu0 0.0
    %468 = vmatpush1.msra.mxu0 0.0
    %469 = vmatprep.subr.mxu0 0.0
    %470 = vmatpush1.msra.mxu0 0.0
    %471 = vmatprep.subr.mxu0 0.0
    %472 = vmatpush1.msra.mxu0 0.0
    %473 = vmatprep.subr.mxu0 0.0
    %474 = vmatpush1.msra.mxu0 0.0
    %475 = vmatprep.subr.mxu0 0.0
    %476 = vmatpush1.msra.mxu0 0.0
    %477 = vmatprep.subr.mxu0 0.0
    %478 = vmatpush1.msra.mxu0 0.0
    %479 = vmatprep.subr.mxu0 0.0
    %480 = vmatpush1.msra.mxu0 0.0
    %481 = vmatprep.subr.mxu0 0.0
    %482 = vmatpush1.msra.mxu0 0.0
    %483 = vmatprep.subr.mxu0 0.0
    %484 = vmatpush1.msra.mxu0 0.0
    %485 = vmatprep.subr.mxu0 0.0
    %486 = vmatpush1.msra.mxu0 0.0
    %487 = vmatprep.subr.mxu0 0.0
    %488 = vmatpush1.msra.mxu0 0.0
    %489 = vmatprep.subr.mxu0 0.0
    %490 = vmatpush1.msra.mxu0 0.0
    %491 = vmatprep.subr.mxu0 0.0
    %492 = vmatpush1.msra.mxu0 0.0
    %493 = vmatprep.subr.mxu0 0.0
    %494 = vmatpush1.msra.mxu0 0.0
    %495 = vmatprep.subr.mxu0 0.0
    %496 = vmatpush1.msra.mxu0 0.0
    %497 = vmatprep.subr.mxu0 0.0
    %498 = vmatpush1.msra.mxu0 0.0
    %499 = vmatprep.subr.mxu0 0.0
    %500 = vmatpush1.msra.mxu0 0.0
    %501 = vmatprep.subr.mxu0 0.0
    %502 = vmatpush1.msra.mxu0 0.0
    %503 = vmatprep.subr.mxu0 0.0
    %504 = vmatpush1.msra.mxu0 0.0
    %505 = vmatprep.subr.mxu0 0.0
    %506 = vmatpush1.msra.mxu0 0.0
    %507 = vmatprep.subr.mxu0 0.0
    %508 = vmatpush1.msra.mxu0 0.0
    %509 = vmatprep.mubr.f32.mxu0 0.0
    %v510 = vand.u32 %v215, 4294901760
    %511 = vmatmul.mubr.f32.gmra.mrb[0].mxu0 %v510
    %v512 = vpop.f32.mrb[0].mxu0
    %v513 = vadd.f32 %v317, %v512
    %v514 = vpop.f32.mrb[0].mxu0
    %v515 = vadd.f32 %v319, %v514
    %516 = vmatprep.mubr.f32.mxu0 0.0
    %v517 = vand.u32 %v218, 4294901760
    %518 = vmatmul.mubr.f32.gmra.mrb[0].mxu0 %v517
    %v519 = vpop.f32.mrb[0].mxu0
    %v520 = vadd.f32 %v328, %v519
    %v521 = vpop.f32.mrb[0].mxu0
    %v522 = vadd.f32 %v330, %v521
    %523 = vmatprep.mubr.f32.mxu0 0.0
    %v524 = vand.u32 %v221, 4294901760
    %525 = vmatmul.mubr.f32.gmra.mrb[0].mxu0 %v524
    %v526 = vpop.f32.mrb[0].mxu0
    %v527 = vadd.f32 %v339, %v526
    %v528 = vpop.f32.mrb[0].mxu0
    %v529 = vadd.f32 %v341, %v528
    %530 = vmatprep.mubr.f32.mxu0 0.0
    %v531 = vand.u32 %v224, 4294901760
    %532 = vmatmul.mubr.f32.gmra.mrb[0].mxu0 %v531
    %v533 = vpop.f32.mrb[0].mxu0
    %v534 = vadd.f32 %v350, %v533
    %v535 = vpop.f32.mrb[0].mxu0
    %v536 = vadd.f32 %v352, %v535
    %537 = vmatprep.mubr.f32.mxu0 0.0
    %v538 = vand.u32 %v227, 4294901760
    %539 = vmatmul.mubr.f32.gmra.mrb[0].mxu0 %v538
    %v540 = vpop.f32.mrb[0].mxu0
    %v541 = vadd.f32 %v361, %v540
    %v542 = vpop.f32.mrb[0].mxu0
    %v543 = vadd.f32 %v363, %v542
    %544 = vdwg.mxu0
    %v545 = vand.u32 %v113, 4294901760
    %v546 = vsub.f32 %v113, %v545
    %547 = vmatprep.subr.mxu0 %v546
    %v548 = vand.u32 %v112, 4294901760
    %v549 = vsub.f32 %v112, %v548
    %550 = vmatpush1.msra.mxu0 %v549
    %v551 = vand.u32 %v115, 4294901760
    %v552 = vsub.f32 %v115, %v551
    %553 = vmatprep.subr.mxu0 %v552
    %v554 = vand.u32 %v114, 4294901760
    %v555 = vsub.f32 %v114, %v554
    %556 = vmatpush1.msra.mxu0 %v555
    %v557 = vand.u32 %v117, 4294901760
    %v558 = vsub.f32 %v117, %v557
    %559 = vmatprep.subr.mxu0 %v558
    %v560 = vand.u32 %v116, 4294901760
    %v561 = vsub.f32 %v116, %v560
    %562 = vmatpush1.msra.mxu0 %v561
    %v563 = vand.u32 %v119, 4294901760
    %v564 = vsub.f32 %v119, %v563
    %565 = vmatprep.subr.mxu0 %v564
    %v566 = vand.u32 %v118, 4294901760
    %v567 = vsub.f32 %v118, %v566
    %568 = vmatpush1.msra.mxu0 %v567
    %v569 = vand.u32 %v121, 4294901760
    %v570 = vsub.f32 %v121, %v569
    %571 = vmatprep.subr.mxu0 %v570
    %v572 = vand.u32 %v120, 4294901760
    %v573 = vsub.f32 %v120, %v572
    %574 = vmatpush1.msra.mxu0 %v573
    %v575 = vand.u32 %v123, 4294901760
    %v576 = vsub.f32 %v123, %v575
    %577 = vmatprep.subr.mxu0 %v576
    %v578 = vand.u32 %v122, 4294901760
    %v579 = vsub.f32 %v122, %v578
    %580 = vmatpush1.msra.mxu0 %v579
    %v581 = vand.u32 %v125, 4294901760
    %v582 = vsub.f32 %v125, %v581
    %583 = vmatprep.subr.mxu0 %v582
    %v584 = vand.u32 %v124, 4294901760
    %v585 = vsub.f32 %v124, %v584
    %586 = vmatpush1.msra.mxu0 %v585
    %v587 = vand.u32 %v127, 4294901760
    %v588 = vsub.f32 %v127, %v587
    %589 = vmatprep.subr.mxu0 %v588
    %v590 = vand.u32 %v126, 4294901760
    %v591 = vsub.f32 %v126, %v590
    %592 = vmatpush1.msra.mxu0 %v591
    %593 = vmatprep.subr.mxu0 0.0
    %594 = vmatpush1.msra.mxu0 0.0
    %595 = vmatprep.subr.mxu0 0.0
    %596 = vmatpush1.msra.mxu0 0.0
    %597 = vmatprep.subr.mxu0 0.0
    %598 = vmatpush1.msra.mxu0 0.0
    %599 = vmatprep.subr.mxu0 0.0
    %600 = vmatpush1.msra.mxu0 0.0
    %601 = vmatprep.subr.mxu0 0.0
    %602 = vmatpush1.msra.mxu0 0.0
    %603 = vmatprep.subr.mxu0 0.0
    %604 = vmatpush1.msra.mxu0 0.0
    %605 = vmatprep.subr.mxu0 0.0
    %606 = vmatpush1.msra.mxu0 0.0
    %607 = vmatprep.subr.mxu0 0.0
    %608 = vmatpush1.msra.mxu0 0.0
    %609 = vmatprep.subr.mxu0 0.0
    %610 = vmatpush1.msra.mxu0 0.0
    %611 = vmatprep.subr.mxu0 0.0
    %612 = vmatpush1.msra.mxu0 0.0
    %613 = vmatprep.subr.mxu0 0.0
    %614 = vmatpush1.msra.mxu0 0.0
    %615 = vmatprep.subr.mxu0 0.0
    %616 = vmatpush1.msra.mxu0 0.0
    %617 = vmatprep.subr.mxu0 0.0
    %618 = vmatpush1.msra.mxu0 0.0
    %619 = vmatprep.subr.mxu0 0.0
    %620 = vmatpush1.msra.mxu0 0.0
    %621 = vmatprep.subr.mxu0 0.0
    %622 = vmatpush1.msra.mxu0 0.0
    %623 = vmatprep.subr.mxu0 0.0
    %624 = vmatpush1.msra.mxu0 0.0
    %625 = vmatprep.subr.mxu0 0.0
    %626 = vmatpush1.msra.mxu0 0.0
    %627 = vmatprep.subr.mxu0 0.0
    %628 = vmatpush1.msra.mxu0 0.0
    %629 = vmatprep.subr.mxu0 0.0
    %630 = vmatpush1.msra.mxu0 0.0
    %631 = vmatprep.subr.mxu0 0.0
    %632 = vmatpush1.msra.mxu0 0.0
    %633 = vmatprep.subr.mxu0 0.0
    %634 = vmatpush1.msra.mxu0 0.0
    %635 = vmatprep.subr.mxu0 0.0
    %636 = vmatpush1.msra.mxu0 0.0
    %637 = vmatprep.subr.mxu0 0.0
    %638 = vmatpush1.msra.mxu0 0.0
    %639 = vmatprep.subr.mxu0 0.0
    %640 = vmatpush1.msra.mxu0 0.0
    %641 = vmatprep.mubr.f32.mxu0 0.0
    %v642 = vand.u32 %v215, 4294901760
    %v643 = vsub.f32 %v215, %v642
    %644 = vmatmul.mubr.f32.gmra.mrb[0].mxu0 %v643
    %v645 = vpop.f32.mrb[0].mxu0
    %v646 = vadd.f32 %v513, %v645
    %v647 = vpop.f32.mrb[0].mxu0
    %v648 = vadd.f32 %v515, %v647
    %649 = vmatprep.mubr.f32.mxu0 0.0
    %v650 = vand.u32 %v218, 4294901760
    %v651 = vsub.f32 %v218, %v650
    %652 = vmatmul.mubr.f32.gmra.mrb[0].mxu0 %v651
    %v653 = vpop.f32.mrb[0].mxu0
    %v654 = vadd.f32 %v520, %v653
    %v655 = vpop.f32.mrb[0].mxu0
    %v656 = vadd.f32 %v522, %v655
    %657 = vmatprep.mubr.f32.mxu0 0.0
    %v658 = vand.u32 %v221, 4294901760
    %v659 = vsub.f32 %v221, %v658
    %660 = vmatmul.mubr.f32.gmra.mrb[0].mxu0 %v659
    %v661 = vpop.f32.mrb[0].mxu0
    %v662 = vadd.f32 %v527, %v661
    %v663 = vpop.f32.mrb[0].mxu0
    %v664 = vadd.f32 %v529, %v663
    %665 = vmatprep.mubr.f32.mxu0 0.0
    %v666 = vand.u32 %v224, 4294901760
    %v667 = vsub.f32 %v224, %v666
    %668 = vmatmul.mubr.f32.gmra.mrb[0].mxu0 %v667
    %v669 = vpop.f32.mrb[0].mxu0
    %v670 = vadd.f32 %v534, %v669
    %v671 = vpop.f32.mrb[0].mxu0
    %v672 = vadd.f32 %v536, %v671
    %673 = vmatprep.mubr.f32.mxu0 0.0
    %v674 = vand.u32 %v227, 4294901760
    %v675 = vsub.f32 %v227, %v674
    %676 = vmatmul.mubr.f32.gmra.mrb[0].mxu0 %v675
    %v677 = vpop.f32.mrb[0].mxu0
    %v678 = vadd.f32 %v541, %v677
    %v679 = vpop.f32.mrb[0].mxu0
    %v680 = vadd.f32 %v543, %v679
    %681 = vdwg.mxu0
    %v682 = vand.u32 %v113, 4294901760
    %683 = vmatprep.subr.mxu0 %v682
    %v684 = vand.u32 %v112, 4294901760
    %685 = vmatpush1.msra.mxu0 %v684
    %v686 = vand.u32 %v115, 4294901760
    %687 = vmatprep.subr.mxu0 %v686
    %v688 = vand.u32 %v114, 4294901760
    %689 = vmatpush1.msra.mxu0 %v688
    %v690 = vand.u32 %v117, 4294901760
    %691 = vmatprep.subr.mxu0 %v690
    %v692 = vand.u32 %v116, 4294901760
    %693 = vmatpush1.msra.mxu0 %v692
    %v694 = vand.u32 %v119, 4294901760
    %695 = vmatprep.subr.mxu0 %v694
    %v696 = vand.u32 %v118, 4294901760
    %697 = vmatpush1.msra.mxu0 %v696
    %v698 = vand.u32 %v121, 4294901760
    %699 = vmatprep.subr.mxu0 %v698
    %v700 = vand.u32 %v120, 4294901760
    %701 = vmatpush1.msra.mxu0 %v700
    %v702 = vand.u32 %v123, 4294901760
    %703 = vmatprep.subr.mxu0 %v702
    %v704 = vand.u32 %v122, 4294901760
    %705 = vmatpush1.msra.mxu0 %v704
    %v706 = vand.u32 %v125, 4294901760
    %707 = vmatprep.subr.mxu0 %v706
    %v708 = vand.u32 %v124, 4294901760
    %709 = vmatpush1.msra.mxu0 %v708
    %v710 = vand.u32 %v127, 4294901760
    %711 = vmatprep.subr.mxu0 %v710
    %v712 = vand.u32 %v126, 4294901760
    %713 = vmatpush1.msra.mxu0 %v712
    %714 = vmatprep.subr.mxu0 0.0
    %715 = vmatpush1.msra.mxu0 0.0
    %716 = vmatprep.subr.mxu0 0.0
    %717 = vmatpush1.msra.mxu0 0.0
    %718 = vmatprep.subr.mxu0 0.0
    %719 = vmatpush1.msra.mxu0 0.0
    %720 = vmatprep.subr.mxu0 0.0
    %721 = vmatpush1.msra.mxu0 0.0
    %722 = vmatprep.subr.mxu0 0.0
    %723 = vmatpush1.msra.mxu0 0.0
    %724 = vmatprep.subr.mxu0 0.0
    %725 = vmatpush1.msra.mxu0 0.0
    %726 = vmatprep.subr.mxu0 0.0
    %727 = vmatpush1.msra.mxu0 0.0
    %728 = vmatprep.subr.mxu0 0.0
    %729 = vmatpush1.msra.mxu0 0.0
    %730 = vmatprep.subr.mxu0 0.0
    %731 = vmatpush1.msra.mxu0 0.0
    %732 = vmatprep.subr.mxu0 0.0
    %733 = vmatpush1.msra.mxu0 0.0
    %734 = vmatprep.subr.mxu0 0.0
    %735 = vmatpush1.msra.mxu0 0.0
    %736 = vmatprep.subr.mxu0 0.0
    %737 = vmatpush1.msra.mxu0 0.0
    %738 = vmatprep.subr.mxu0 0.0
    %739 = vmatpush1.msra.mxu0 0.0
    %740 = vmatprep.subr.mxu0 0.0
    %741 = vmatpush1.msra.mxu0 0.0
    %742 = vmatprep.subr.mxu0 0.0
    %743 = vmatpush1.msra.mxu0 0.0
    %744 = vmatprep.subr.mxu0 0.0
    %745 = vmatpush1.msra.mxu0 0.0
    %746 = vmatprep.subr.mxu0 0.0
    %747 = vmatpush1.msra.mxu0 0.0
    %748 = vmatprep.subr.mxu0 0.0
    %749 = vmatpush1.msra.mxu0 0.0
    %750 = vmatprep.subr.mxu0 0.0
    %751 = vmatpush1.msra.mxu0 0.0
    %752 = vmatprep.subr.mxu0 0.0
    %753 = vmatpush1.msra.mxu0 0.0
    %754 = vmatprep.subr.mxu0 0.0
    %755 = vmatpush1.msra.mxu0 0.0
    %756 = vmatprep.subr.mxu0 0.0
    %757 = vmatpush1.msra.mxu0 0.0
    %758 = vmatprep.subr.mxu0 0.0
    %759 = vmatpush1.msra.mxu0 0.0
    %760 = vmatprep.subr.mxu0 0.0
    %761 = vmatpush1.msra.mxu0 0.0
    %762 = vmatprep.mubr.f32.mxu0 0.0
    %v763 = vand.u32 %v215, 4294901760
    %v764 = vsub.f32 %v215, %v763
    %v765 = vand.u32 %v764, 4294901760
    %766 = vmatmul.mubr.f32.gmra.mrb[0].mxu0 %v765
    %v767 = vpop.f32.mrb[0].mxu0
    %v768 = vadd.f32 %v646, %v767
    %v769 = vpop.f32.mrb[0].mxu0
    %v770 = vadd.f32 %v648, %v769
    %771 = vmatprep.mubr.f32.mxu0 0.0
    %v772 = vand.u32 %v218, 4294901760
    %v773 = vsub.f32 %v218, %v772
    %v774 = vand.u32 %v773, 4294901760
    %775 = vmatmul.mubr.f32.gmra.mrb[0].mxu0 %v774
    %v776 = vpop.f32.mrb[0].mxu0
    %v777 = vadd.f32 %v654, %v776
    %v778 = vpop.f32.mrb[0].mxu0
    %v779 = vadd.f32 %v656, %v778
    %780 = vmatprep.mubr.f32.mxu0 0.0
    %v781 = vand.u32 %v221, 4294901760
    %v782 = vsub.f32 %v221, %v781
    %v783 = vand.u32 %v782, 4294901760
    %784 = vmatmul.mubr.f32.gmra.mrb[0].mxu0 %v783
    %v785 = vpop.f32.mrb[0].mxu0
    %v786 = vadd.f32 %v662, %v785
    %v787 = vpop.f32.mrb[0].mxu0
    %v788 = vadd.f32 %v664, %v787
    %789 = vmatprep.mubr.f32.mxu0 0.0
    %v790 = vand.u32 %v224, 4294901760
    %v791 = vsub.f32 %v224, %v790
    %v792 = vand.u32 %v791, 4294901760
    %793 = vmatmul.mubr.f32.gmra.mrb[0].mxu0 %v792
    %v794 = vpop.f32.mrb[0].mxu0
    %v795 = vadd.f32 %v670, %v794
    %v796 = vpop.f32.mrb[0].mxu0
    %v797 = vadd.f32 %v672, %v796
    %798 = vmatprep.mubr.f32.mxu0 0.0
    %v799 = vand.u32 %v227, 4294901760
    %v800 = vsub.f32 %v227, %v799
    %v801 = vand.u32 %v800, 4294901760
    %802 = vmatmul.mubr.f32.gmra.mrb[0].mxu0 %v801
    %v803 = vpop.f32.mrb[0].mxu0
    %v804 = vadd.f32 %v678, %v803
    %v805 = vpop.f32.mrb[0].mxu0
    %v806 = vadd.f32 %v680, %v805
    %807 = vdwg.mxu0
    %v808 = vand.u32 %v113, 4294901760
    %v809 = vsub.f32 %v113, %v808
    %v810 = vand.u32 %v809, 4294901760
    %811 = vmatprep.subr.mxu0 %v810
    %v812 = vand.u32 %v112, 4294901760
    %v813 = vsub.f32 %v112, %v812
    %v814 = vand.u32 %v813, 4294901760
    %815 = vmatpush1.msra.mxu0 %v814
    %v816 = vand.u32 %v115, 4294901760
    %v817 = vsub.f32 %v115, %v816
    %v818 = vand.u32 %v817, 4294901760
    %819 = vmatprep.subr.mxu0 %v818
    %v820 = vand.u32 %v114, 4294901760
    %v821 = vsub.f32 %v114, %v820
    %v822 = vand.u32 %v821, 4294901760
    %823 = vmatpush1.msra.mxu0 %v822
    %v824 = vand.u32 %v117, 4294901760
    %v825 = vsub.f32 %v117, %v824
    %v826 = vand.u32 %v825, 4294901760
    %827 = vmatprep.subr.mxu0 %v826
    %v828 = vand.u32 %v116, 4294901760
    %v829 = vsub.f32 %v116, %v828
    %v830 = vand.u32 %v829, 4294901760
    %831 = vmatpush1.msra.mxu0 %v830
    %v832 = vand.u32 %v119, 4294901760
    %v833 = vsub.f32 %v119, %v832
    %v834 = vand.u32 %v833, 4294901760
    %835 = vmatprep.subr.mxu0 %v834
    %v836 = vand.u32 %v118, 4294901760
    %v837 = vsub.f32 %v118, %v836
    %v838 = vand.u32 %v837, 4294901760
    %839 = vmatpush1.msra.mxu0 %v838
    %v840 = vand.u32 %v121, 4294901760
    %v841 = vsub.f32 %v121, %v840
    %v842 = vand.u32 %v841, 4294901760
    %843 = vmatprep.subr.mxu0 %v842
    %v844 = vand.u32 %v120, 4294901760
    %v845 = vsub.f32 %v120, %v844
    %v846 = vand.u32 %v845, 4294901760
    %847 = vmatpush1.msra.mxu0 %v846
    %v848 = vand.u32 %v123, 4294901760
    %v849 = vsub.f32 %v123, %v848
    %v850 = vand.u32 %v849, 4294901760
    %851 = vmatprep.subr.mxu0 %v850
    %v852 = vand.u32 %v122, 4294901760
    %v853 = vsub.f32 %v122, %v852
    %v854 = vand.u32 %v853, 4294901760
    %855 = vmatpush1.msra.mxu0 %v854
    %v856 = vand.u32 %v125, 4294901760
    %v857 = vsub.f32 %v125, %v856
    %v858 = vand.u32 %v857, 4294901760
    %859 = vmatprep.subr.mxu0 %v858
    %v860 = vand.u32 %v124, 4294901760
    %v861 = vsub.f32 %v124, %v860
    %v862 = vand.u32 %v861, 4294901760
    %863 = vmatpush1.msra.mxu0 %v862
    %v864 = vand.u32 %v127, 4294901760
    %v865 = vsub.f32 %v127, %v864
    %v866 = vand.u32 %v865, 4294901760
    %867 = vmatprep.subr.mxu0 %v866
    %v868 = vand.u32 %v126, 4294901760
    %v869 = vsub.f32 %v126, %v868
    %v870 = vand.u32 %v869, 4294901760
    %871 = vmatpush1.msra.mxu0 %v870
    %872 = vmatprep.subr.mxu0 0.0
    %873 = vmatpush1.msra.mxu0 0.0
    %874 = vmatprep.subr.mxu0 0.0
    %875 = vmatpush1.msra.mxu0 0.0
    %876 = vmatprep.subr.mxu0 0.0
    %877 = vmatpush1.msra.mxu0 0.0
    %878 = vmatprep.subr.mxu0 0.0
    %879 = vmatpush1.msra.mxu0 0.0
    %880 = vmatprep.subr.mxu0 0.0
    %881 = vmatpush1.msra.mxu0 0.0
    %882 = vmatprep.subr.mxu0 0.0
    %883 = vmatpush1.msra.mxu0 0.0
    %884 = vmatprep.subr.mxu0 0.0
    %885 = vmatpush1.msra.mxu0 0.0
    %886 = vmatprep.subr.mxu0 0.0
    %887 = vmatpush1.msra.mxu0 0.0
    %888 = vmatprep.subr.mxu0 0.0
    %889 = vmatpush1.msra.mxu0 0.0
    %890 = vmatprep.subr.mxu0 0.0
    %891 = vmatpush1.msra.mxu0 0.0
    %892 = vmatprep.subr.mxu0 0.0
    %893 = vmatpush1.msra.mxu0 0.0
    %894 = vmatprep.subr.mxu0 0.0
    %895 = vmatpush1.msra.mxu0 0.0
    %896 = vmatprep.subr.mxu0 0.0
    %897 = vmatpush1.msra.mxu0 0.0
    %898 = vmatprep.subr.mxu0 0.0
    %899 = vmatpush1.msra.mxu0 0.0
    %900 = vmatprep.subr.mxu0 0.0
    %901 = vmatpush1.msra.mxu0 0.0
    %902 = vmatprep.subr.mxu0 0.0
    %903 = vmatpush1.msra.mxu0 0.0
    %904 = vmatprep.subr.mxu0 0.0
    %905 = vmatpush1.msra.mxu0 0.0
    %906 = vmatprep.subr.mxu0 0.0
    %907 = vmatpush1.msra.mxu0 0.0
    %908 = vmatprep.subr.mxu0 0.0
    %909 = vmatpush1.msra.mxu0 0.0
    %910 = vmatprep.subr.mxu0 0.0
    %911 = vmatpush1.msra.mxu0 0.0
    %912 = vmatprep.subr.mxu0 0.0
    %913 = vmatpush1.msra.mxu0 0.0
    %914 = vmatprep.subr.mxu0 0.0
    %915 = vmatpush1.msra.mxu0 0.0
    %916 = vmatprep.subr.mxu0 0.0
    %917 = vmatpush1.msra.mxu0 0.0
    %918 = vmatprep.subr.mxu0 0.0
    %919 = vmatpush1.msra.mxu0 0.0
    %920 = vmatprep.mubr.f32.mxu0 0.0
    %v921 = vand.u32 %v215, 4294901760
    %922 = vmatmul.mubr.f32.gmra.mrb[0].mxu0 %v921
    %v923 = vpop.f32.mrb[0].mxu0
    %v924 = vadd.f32 %v768, %v923
    %v925 = vpop.f32.mrb[0].mxu0
    %v926 = vadd.f32 %v770, %v925
    %927 = vmatprep.mubr.f32.mxu0 0.0
    %v928 = vand.u32 %v218, 4294901760
    %929 = vmatmul.mubr.f32.gmra.mrb[0].mxu0 %v928
    %v930 = vpop.f32.mrb[0].mxu0
    %v931 = vadd.f32 %v777, %v930
    %v932 = vpop.f32.mrb[0].mxu0
    %v933 = vadd.f32 %v779, %v932
    %934 = vmatprep.mubr.f32.mxu0 0.0
    %v935 = vand.u32 %v221, 4294901760
    %936 = vmatmul.mubr.f32.gmra.mrb[0].mxu0 %v935
    %v937 = vpop.f32.mrb[0].mxu0
    %v938 = vadd.f32 %v786, %v937
    %v939 = vpop.f32.mrb[0].mxu0
    %v940 = vadd.f32 %v788, %v939
    %941 = vmatprep.mubr.f32.mxu0 0.0
    %v942 = vand.u32 %v224, 4294901760
    %943 = vmatmul.mubr.f32.gmra.mrb[0].mxu0 %v942
    %v944 = vpop.f32.mrb[0].mxu0
    %v945 = vadd.f32 %v795, %v944
    %v946 = vpop.f32.mrb[0].mxu0
    %v947 = vadd.f32 %v797, %v946
    %948 = vmatprep.mubr.f32.mxu0 0.0
    %v949 = vand.u32 %v227, 4294901760
    %950 = vmatmul.mubr.f32.gmra.mrb[0].mxu0 %v949
    %v951 = vpop.f32.mrb[0].mxu0
    %v952 = vadd.f32 %v804, %v951
    %v953 = vpop.f32.mrb[0].mxu0
    %v954 = vadd.f32 %v806, %v953
    %955 = vdwg.mxu0
    %v956 = vand.u32 %v113, 4294901760
    %957 = vmatprep.subr.mxu0 %v956
    %v958 = vand.u32 %v112, 4294901760
    %959 = vmatpush1.msra.mxu0 %v958
    %v960 = vand.u32 %v115, 4294901760
    %961 = vmatprep.subr.mxu0 %v960
    %v962 = vand.u32 %v114, 4294901760
    %963 = vmatpush1.msra.mxu0 %v962
    %v964 = vand.u32 %v117, 4294901760
    %965 = vmatprep.subr.mxu0 %v964
    %v966 = vand.u32 %v116, 4294901760
    %967 = vmatpush1.msra.mxu0 %v966
    %v968 = vand.u32 %v119, 4294901760
    %969 = vmatprep.subr.mxu0 %v968
    %v970 = vand.u32 %v118, 4294901760
    %971 = vmatpush1.msra.mxu0 %v970
    %v972 = vand.u32 %v121, 4294901760
    %973 = vmatprep.subr.mxu0 %v972
    %v974 = vand.u32 %v120, 4294901760
    %975 = vmatpush1.msra.mxu0 %v974
    %v976 = vand.u32 %v123, 4294901760
    %977 = vmatprep.subr.mxu0 %v976
    %v978 = vand.u32 %v122, 4294901760
    %979 = vmatpush1.msra.mxu0 %v978
    %v980 = vand.u32 %v125, 4294901760
    %981 = vmatprep.subr.mxu0 %v980
    %v982 = vand.u32 %v124, 4294901760
    %983 = vmatpush1.msra.mxu0 %v982
    %v984 = vand.u32 %v127, 4294901760
    %985 = vmatprep.subr.mxu0 %v984
    %v986 = vand.u32 %v126, 4294901760
    %987 = vmatpush1.msra.mxu0 %v986
    %988 = vmatprep.subr.mxu0 0.0
    %989 = vmatpush1.msra.mxu0 0.0
    %990 = vmatprep.subr.mxu0 0.0
    %991 = vmatpush1.msra.mxu0 0.0
    %992 = vmatprep.subr.mxu0 0.0
    %993 = vmatpush1.msra.mxu0 0.0
    %994 = vmatprep.subr.mxu0 0.0
    %995 = vmatpush1.msra.mxu0 0.0
    %996 = vmatprep.subr.mxu0 0.0
    %997 = vmatpush1.msra.mxu0 0.0
    %998 = vmatprep.subr.mxu0 0.0
    %999 = vmatpush1.msra.mxu0 0.0
    %1000 = vmatprep.subr.mxu0 0.0
    %1001 = vmatpush1.msra.mxu0 0.0
    %1002 = vmatprep.subr.mxu0 0.0
    %1003 = vmatpush1.msra.mxu0 0.0
    %1004 = vmatprep.subr.mxu0 0.0
    %1005 = vmatpush1.msra.mxu0 0.0
    %1006 = vmatprep.subr.mxu0 0.0
    %1007 = vmatpush1.msra.mxu0 0.0
    %1008 = vmatprep.subr.mxu0 0.0
    %1009 = vmatpush1.msra.mxu0 0.0
    %1010 = vmatprep.subr.mxu0 0.0
    %1011 = vmatpush1.msra.mxu0 0.0
    %1012 = vmatprep.subr.mxu0 0.0
    %1013 = vmatpush1.msra.mxu0 0.0
    %1014 = vmatprep.subr.mxu0 0.0
    %1015 = vmatpush1.msra.mxu0 0.0
    %1016 = vmatprep.subr.mxu0 0.0
    %1017 = vmatpush1.msra.mxu0 0.0
    %1018 = vmatprep.subr.mxu0 0.0
    %1019 = vmatpush1.msra.mxu0 0.0
    %1020 = vmatprep.subr.mxu0 0.0
    %1021 = vmatpush1.msra.mxu0 0.0
    %1022 = vmatprep.subr.mxu0 0.0
    %1023 = vmatpush1.msra.mxu0 0.0
    %1024 = vmatprep.subr.mxu0 0.0
    %1025 = vmatpush1.msra.mxu0 0.0
    %1026 = vmatprep.subr.mxu0 0.0
    %1027 = vmatpush1.msra.mxu0 0.0
    %1028 = vmatprep.subr.mxu0 0.0
    %1029 = vmatpush1.msra.mxu0 0.0
    %1030 = vmatprep.subr.mxu0 0.0
    %1031 = vmatpush1.msra.mxu0 0.0
    %1032 = vmatprep.subr.mxu0 0.0
    %1033 = vmatpush1.msra.mxu0 0.0
    %1034 = vmatprep.subr.mxu0 0.0
    %1035 = vmatpush1.msra.mxu0 0.0
    %1036 = vmatprep.mubr.f32.mxu0 0.0
    %v1037 = vand.u32 %v215, 4294901760
    %1038 = vmatmul.mubr.f32.gmra.mrb[0].mxu0 %v1037
    %v1039 = vpop.f32.mrb[0].mxu0
    %v1040 = vadd.f32 %v924, %v1039
    %v1041 = vpop.f32.mrb[0].mxu0
    %v1042 = vadd.f32 %v926, %v1041
    %1043 = vmatprep.mubr.f32.mxu0 0.0
    %v1044 = vand.u32 %v218, 4294901760
    %1045 = vmatmul.mubr.f32.gmra.mrb[0].mxu0 %v1044
    %v1046 = vpop.f32.mrb[0].mxu0
    %v1047 = vadd.f32 %v931, %v1046
    %v1048 = vpop.f32.mrb[0].mxu0
    %v1049 = vadd.f32 %v933, %v1048
    %1050 = vmatprep.mubr.f32.mxu0 0.0
    %v1051 = vand.u32 %v221, 4294901760
    %1052 = vmatmul.mubr.f32.gmra.mrb[0].mxu0 %v1051
    %v1053 = vpop.f32.mrb[0].mxu0
    %v1054 = vadd.f32 %v938, %v1053
    %v1055 = vpop.f32.mrb[0].mxu0
    %v1056 = vadd.f32 %v940, %v1055
    %1057 = vmatprep.mubr.f32.mxu0 0.0
    %v1058 = vand.u32 %v224, 4294901760
    %1059 = vmatmul.mubr.f32.gmra.mrb[0].mxu0 %v1058
    %v1060 = vpop.f32.mrb[0].mxu0
    %v1061 = vadd.f32 %v945, %v1060
    %v1062 = vpop.f32.mrb[0].mxu0
    %v1063 = vadd.f32 %v947, %v1062
    %1064 = vmatprep.mubr.f32.mxu0 0.0
    %v1065 = vand.u32 %v227, 4294901760
    %1066 = vmatmul.mubr.f32.gmra.mrb[0].mxu0 %v1065
    %v1067 = vpop.f32.mrb[0].mxu0
    %v1068 = vadd.f32 %v952, %v1067
    %v1069 = vpop.f32.mrb[0].mxu0
    %v1070 = vadd.f32 %v954, %v1069
    %1071 = vdwg.mxu0
    %v1072 = vld [vmem:[#allocation7] sm:$0xff]
    %v1073 = vld [vmem:[#allocation7 + $0x8] sm:$0xff]
    %v1074 = vld [vmem:[#allocation7 + $0x10] sm:$0xff]
    %v1075 = vld [vmem:[#allocation7 + $0x18] sm:$0xff]
    %v1076 = vld [vmem:[#allocation7 + $0x20] sm:$0xff]
    %vm1077 = vcmask 785408
    %v1079 = vsel %vm1077, %v1072, 0
    %v1082 = vsel %vm1077, %v1073, 0
    %v1085 = vsel %vm1077, %v1074, 0
    %v1088 = vsel %vm1077, %v1075, 0
    %v1091 = vsel %vm1077, %v1076, 0
    %v1093 = vand.u32 %v185, 4294901760
    %1094 = vmatprep.subr.mxu0 %v1093
    %v1095 = vand.u32 %v184, 4294901760
    %1096 = vmatpush1.msra.mxu0 %v1095
    %v1097 = vand.u32 %v187, 4294901760
    %1098 = vmatprep.subr.mxu0 %v1097
    %v1099 = vand.u32 %v186, 4294901760
    %1100 = vmatpush1.msra.mxu0 %v1099
    %v1101 = vand.u32 %v189, 4294901760
    %1102 = vmatprep.subr.mxu0 %v1101
    %v1103 = vand.u32 %v188, 4294901760
    %1104 = vmatpush1.msra.mxu0 %v1103
    %v1105 = vand.u32 %v191, 4294901760
    %1106 = vmatprep.subr.mxu0 %v1105
    %v1107 = vand.u32 %v190, 4294901760
    %1108 = vmatpush1.msra.mxu0 %v1107
    %v1109 = vand.u32 %v193, 4294901760
    %1110 = vmatprep.subr.mxu0 %v1109
    %v1111 = vand.u32 %v192, 4294901760
    %1112 = vmatpush1.msra.mxu0 %v1111
    %v1113 = vand.u32 %v195, 4294901760
    %1114 = vmatprep.subr.mxu0 %v1113
    %v1115 = vand.u32 %v194, 4294901760
    %1116 = vmatpush1.msra.mxu0 %v1115
    %v1117 = vand.u32 %v197, 4294901760
    %1118 = vmatprep.subr.mxu0 %v1117
    %v1119 = vand.u32 %v196, 4294901760
    %1120 = vmatpush1.msra.mxu0 %v1119
    %v1121 = vand.u32 %v199, 4294901760
    %1122 = vmatprep.subr.mxu0 %v1121
    %v1123 = vand.u32 %v198, 4294901760
    %1124 = vmatpush1.msra.mxu0 %v1123
    %v1125 = vand.u32 %v201, 4294901760
    %1126 = vmatprep.subr.mxu0 %v1125
    %v1127 = vand.u32 %v200, 4294901760
    %1128 = vmatpush1.msra.mxu0 %v1127
    %v1129 = vand.u32 %v203, 4294901760
    %1130 = vmatprep.subr.mxu0 %v1129
    %v1131 = vand.u32 %v202, 4294901760
    %1132 = vmatpush1.msra.mxu0 %v1131
    %v1133 = vand.u32 %v205, 4294901760
    %1134 = vmatprep.subr.mxu0 %v1133
    %v1135 = vand.u32 %v204, 4294901760
    %1136 = vmatpush1.msra.mxu0 %v1135
    %v1137 = vand.u32 %v207, 4294901760
    %1138 = vmatprep.subr.mxu0 %v1137
    %v1139 = vand.u32 %v206, 4294901760
    %1140 = vmatpush1.msra.mxu0 %v1139
    %1141 = vmatprep.subr.mxu0 0.0
    %1142 = vmatpush1.msra.mxu0 0.0
    %1143 = vmatprep.subr.mxu0 0.0
    %1144 = vmatpush1.msra.mxu0 0.0
    %1145 = vmatprep.subr.mxu0 0.0
    %1146 = vmatpush1.msra.mxu0 0.0
    %1147 = vmatprep.subr.mxu0 0.0
    %1148 = vmatpush1.msra.mxu0 0.0
    %1149 = vmatprep.subr.mxu0 0.0
    %1150 = vmatpush1.msra.mxu0 0.0
    %1151 = vmatprep.subr.mxu0 0.0
    %1152 = vmatpush1.msra.mxu0 0.0
    %1153 = vmatprep.subr.mxu0 0.0
    %1154 = vmatpush1.msra.mxu0 0.0
    %1155 = vmatprep.subr.mxu0 0.0
    %1156 = vmatpush1.msra.mxu0 0.0
    %1157 = vmatprep.subr.mxu0 0.0
    %1158 = vmatpush1.msra.mxu0 0.0
    %1159 = vmatprep.subr.mxu0 0.0
    %1160 = vmatpush1.msra.mxu0 0.0
    %1161 = vmatprep.subr.mxu0 0.0
    %1162 = vmatpush1.msra.mxu0 0.0
    %1163 = vmatprep.subr.mxu0 0.0
    %1164 = vmatpush1.msra.mxu0 0.0
    %1165 = vmatprep.subr.mxu0 0.0
    %1166 = vmatpush1.msra.mxu0 0.0
    %1167 = vmatprep.subr.mxu0 0.0
    %1168 = vmatpush1.msra.mxu0 0.0
    %1169 = vmatprep.subr.mxu0 0.0
    %1170 = vmatpush1.msra.mxu0 0.0
    %1171 = vmatprep.subr.mxu0 0.0
    %1172 = vmatpush1.msra.mxu0 0.0
    %1173 = vmatprep.subr.mxu0 0.0
    %1174 = vmatpush1.msra.mxu0 0.0
    %1175 = vmatprep.subr.mxu0 0.0
    %1176 = vmatpush1.msra.mxu0 0.0
    %1177 = vmatprep.subr.mxu0 0.0
    %1178 = vmatpush1.msra.mxu0 0.0
    %1179 = vmatprep.subr.mxu0 0.0
    %1180 = vmatpush1.msra.mxu0 0.0
    %1181 = vmatprep.mubr.f32.mxu0 0.0
    %v1182 = vand.u32 %v1079, 4294901760
    %v1183 = vsub.f32 %v1079, %v1182
    %v1184 = vand.u32 %v1183, 4294901760
    %v1185 = vsub.f32 %v1183, %v1184
    %v1186 = vand.u32 %v1185, 4294901760
    %1187 = vmatmul.mubr.f32.gmra.mrb[0].mxu0 %v1186
    %v1188 = vpop.f32.mrb[0].mxu0
    %v1189 = vadd.f32 0.0, %v1188
    %v1190 = vpop.f32.mrb[0].mxu0
    %v1191 = vadd.f32 0.0, %v1190
    %1192 = vmatprep.mubr.f32.mxu0 0.0
    %v1193 = vand.u32 %v1082, 4294901760
    %v1194 = vsub.f32 %v1082, %v1193
    %v1195 = vand.u32 %v1194, 4294901760
    %v1196 = vsub.f32 %v1194, %v1195
    %v1197 = vand.u32 %v1196, 4294901760
    %1198 = vmatmul.mubr.f32.gmra.mrb[0].mxu0 %v1197
    %v1199 = vpop.f32.mrb[0].mxu0
    %v1200 = vadd.f32 0.0, %v1199
    %v1201 = vpop.f32.mrb[0].mxu0
    %v1202 = vadd.f32 0.0, %v1201
    %1203 = vmatprep.mubr.f32.mxu0 0.0
    %v1204 = vand.u32 %v1085, 4294901760
    %v1205 = vsub.f32 %v1085, %v1204
    %v1206 = vand.u32 %v1205, 4294901760
    %v1207 = vsub.f32 %v1205, %v1206
    %v1208 = vand.u32 %v1207, 4294901760
    %1209 = vmatmul.mubr.f32.gmra.mrb[0].mxu0 %v1208
    %v1210 = vpop.f32.mrb[0].mxu0
    %v1211 = vadd.f32 0.0, %v1210
    %v1212 = vpop.f32.mrb[0].mxu0
    %v1213 = vadd.f32 0.0, %v1212
    %1214 = vmatprep.mubr.f32.mxu0 0.0
    %v1215 = vand.u32 %v1088, 4294901760
    %v1216 = vsub.f32 %v1088, %v1215
    %v1217 = vand.u32 %v1216, 4294901760
    %v1218 = vsub.f32 %v1216, %v1217
    %v1219 = vand.u32 %v1218, 4294901760
    %1220 = vmatmul.mubr.f32.gmra.mrb[0].mxu0 %v1219
    %v1221 = vpop.f32.mrb[0].mxu0
    %v1222 = vadd.f32 0.0, %v1221
    %v1223 = vpop.f32.mrb[0].mxu0
    %v1224 = vadd.f32 0.0, %v1223
    %1225 = vmatprep.mubr.f32.mxu0 0.0
    %v1226 = vand.u32 %v1091, 4294901760
    %v1227 = vsub.f32 %v1091, %v1226
    %v1228 = vand.u32 %v1227, 4294901760
    %v1229 = vsub.f32 %v1227, %v1228
    %v1230 = vand.u32 %v1229, 4294901760
    %1231 = vmatmul.mubr.f32.gmra.mrb[0].mxu0 %v1230
    %v1232 = vpop.f32.mrb[0].mxu0
    %v1233 = vadd.f32 0.0, %v1232
    %v1234 = vpop.f32.mrb[0].mxu0
    %v1235 = vadd.f32 0.0, %v1234
    %1236 = vdwg.mxu0
    %v1237 = vand.u32 %v185, 4294901760
    %v1238 = vsub.f32 %v185, %v1237
    %v1239 = vand.u32 %v1238, 4294901760
    %v1240 = vsub.f32 %v1238, %v1239
    %v1241 = vand.u32 %v1240, 4294901760
    %1242 = vmatprep.subr.mxu0 %v1241
    %v1243 = vand.u32 %v184, 4294901760
    %v1244 = vsub.f32 %v184, %v1243
    %v1245 = vand.u32 %v1244, 4294901760
    %v1246 = vsub.f32 %v1244, %v1245
    %v1247 = vand.u32 %v1246, 4294901760
    %1248 = vmatpush1.msra.mxu0 %v1247
    %v1249 = vand.u32 %v187, 4294901760
    %v1250 = vsub.f32 %v187, %v1249
    %v1251 = vand.u32 %v1250, 4294901760
    %v1252 = vsub.f32 %v1250, %v1251
    %v1253 = vand.u32 %v1252, 4294901760
    %1254 = vmatprep.subr.mxu0 %v1253
    %v1255 = vand.u32 %v186, 4294901760
    %v1256 = vsub.f32 %v186, %v1255
    %v1257 = vand.u32 %v1256, 4294901760
    %v1258 = vsub.f32 %v1256, %v1257
    %v1259 = vand.u32 %v1258, 4294901760
    %1260 = vmatpush1.msra.mxu0 %v1259
    %v1261 = vand.u32 %v189, 4294901760
    %v1262 = vsub.f32 %v189, %v1261
    %v1263 = vand.u32 %v1262, 4294901760
    %v1264 = vsub.f32 %v1262, %v1263
    %v1265 = vand.u32 %v1264, 4294901760
    %1266 = vmatprep.subr.mxu0 %v1265
    %v1267 = vand.u32 %v188, 4294901760
    %v1268 = vsub.f32 %v188, %v1267
    %v1269 = vand.u32 %v1268, 4294901760
    %v1270 = vsub.f32 %v1268, %v1269
    %v1271 = vand.u32 %v1270, 4294901760
    %1272 = vmatpush1.msra.mxu0 %v1271
    %v1273 = vand.u32 %v191, 4294901760
    %v1274 = vsub.f32 %v191, %v1273
    %v1275 = vand.u32 %v1274, 4294901760
    %v1276 = vsub.f32 %v1274, %v1275
    %v1277 = vand.u32 %v1276, 4294901760
    %1278 = vmatprep.subr.mxu0 %v1277
    %v1279 = vand.u32 %v190, 4294901760
    %v1280 = vsub.f32 %v190, %v1279
    %v1281 = vand.u32 %v1280, 4294901760
    %v1282 = vsub.f32 %v1280, %v1281
    %v1283 = vand.u32 %v1282, 4294901760
    %1284 = vmatpush1.msra.mxu0 %v1283
    %v1285 = vand.u32 %v193, 4294901760
    %v1286 = vsub.f32 %v193, %v1285
    %v1287 = vand.u32 %v1286, 4294901760
    %v1288 = vsub.f32 %v1286, %v1287
    %v1289 = vand.u32 %v1288, 4294901760
    %1290 = vmatprep.subr.mxu0 %v1289
    %v1291 = vand.u32 %v192, 4294901760
    %v1292 = vsub.f32 %v192, %v1291
    %v1293 = vand.u32 %v1292, 4294901760
    %v1294 = vsub.f32 %v1292, %v1293
    %v1295 = vand.u32 %v1294, 4294901760
    %1296 = vmatpush1.msra.mxu0 %v1295
    %v1297 = vand.u32 %v195, 4294901760
    %v1298 = vsub.f32 %v195, %v1297
    %v1299 = vand.u32 %v1298, 4294901760
    %v1300 = vsub.f32 %v1298, %v1299
    %v1301 = vand.u32 %v1300, 4294901760
    %1302 = vmatprep.subr.mxu0 %v1301
    %v1303 = vand.u32 %v194, 4294901760
    %v1304 = vsub.f32 %v194, %v1303
    %v1305 = vand.u32 %v1304, 4294901760
    %v1306 = vsub.f32 %v1304, %v1305
    %v1307 = vand.u32 %v1306, 4294901760
    %1308 = vmatpush1.msra.mxu0 %v1307
    %v1309 = vand.u32 %v197, 4294901760
    %v1310 = vsub.f32 %v197, %v1309
    %v1311 = vand.u32 %v1310, 4294901760
    %v1312 = vsub.f32 %v1310, %v1311
    %v1313 = vand.u32 %v1312, 4294901760
    %1314 = vmatprep.subr.mxu0 %v1313
    %v1315 = vand.u32 %v196, 4294901760
    %v1316 = vsub.f32 %v196, %v1315
    %v1317 = vand.u32 %v1316, 4294901760
    %v1318 = vsub.f32 %v1316, %v1317
    %v1319 = vand.u32 %v1318, 4294901760
    %1320 = vmatpush1.msra.mxu0 %v1319
    %v1321 = vand.u32 %v199, 4294901760
    %v1322 = vsub.f32 %v199, %v1321
    %v1323 = vand.u32 %v1322, 4294901760
    %v1324 = vsub.f32 %v1322, %v1323
    %v1325 = vand.u32 %v1324, 4294901760
    %1326 = vmatprep.subr.mxu0 %v1325
    %v1327 = vand.u32 %v198, 4294901760
    %v1328 = vsub.f32 %v198, %v1327
    %v1329 = vand.u32 %v1328, 4294901760
    %v1330 = vsub.f32 %v1328, %v1329
    %v1331 = vand.u32 %v1330, 4294901760
    %1332 = vmatpush1.msra.mxu0 %v1331
    %v1333 = vand.u32 %v201, 4294901760
    %v1334 = vsub.f32 %v201, %v1333
    %v1335 = vand.u32 %v1334, 4294901760
    %v1336 = vsub.f32 %v1334, %v1335
    %v1337 = vand.u32 %v1336, 4294901760
    %1338 = vmatprep.subr.mxu0 %v1337
    %v1339 = vand.u32 %v200, 4294901760
    %v1340 = vsub.f32 %v200, %v1339
    %v1341 = vand.u32 %v1340, 4294901760
    %v1342 = vsub.f32 %v1340, %v1341
    %v1343 = vand.u32 %v1342, 4294901760
    %1344 = vmatpush1.msra.mxu0 %v1343
    %v1345 = vand.u32 %v203, 4294901760
    %v1346 = vsub.f32 %v203, %v1345
    %v1347 = vand.u32 %v1346, 4294901760
    %v1348 = vsub.f32 %v1346, %v1347
    %v1349 = vand.u32 %v1348, 4294901760
    %1350 = vmatprep.subr.mxu0 %v1349
    %v1351 = vand.u32 %v202, 4294901760
    %v1352 = vsub.f32 %v202, %v1351
    %v1353 = vand.u32 %v1352, 4294901760
    %v1354 = vsub.f32 %v1352, %v1353
    %v1355 = vand.u32 %v1354, 4294901760
    %1356 = vmatpush1.msra.mxu0 %v1355
    %v1357 = vand.u32 %v205, 4294901760
    %v1358 = vsub.f32 %v205, %v1357
    %v1359 = vand.u32 %v1358, 4294901760
    %v1360 = vsub.f32 %v1358, %v1359
    %v1361 = vand.u32 %v1360, 4294901760
    %1362 = vmatprep.subr.mxu0 %v1361
    %v1363 = vand.u32 %v204, 4294901760
    %v1364 = vsub.f32 %v204, %v1363
    %v1365 = vand.u32 %v1364, 4294901760
    %v1366 = vsub.f32 %v1364, %v1365
    %v1367 = vand.u32 %v1366, 4294901760
    %1368 = vmatpush1.msra.mxu0 %v1367
    %v1369 = vand.u32 %v207, 4294901760
    %v1370 = vsub.f32 %v207, %v1369
    %v1371 = vand.u32 %v1370, 4294901760
    %v1372 = vsub.f32 %v1370, %v1371
    %v1373 = vand.u32 %v1372, 4294901760
    %1374 = vmatprep.subr.mxu0 %v1373
    %v1375 = vand.u32 %v206, 4294901760
    %v1376 = vsub.f32 %v206, %v1375
    %v1377 = vand.u32 %v1376, 4294901760
    %v1378 = vsub.f32 %v1376, %v1377
    %v1379 = vand.u32 %v1378, 4294901760
    %1380 = vmatpush1.msra.mxu0 %v1379
    %1381 = vmatprep.subr.mxu0 0.0
    %1382 = vmatpush1.msra.mxu0 0.0
    %1383 = vmatprep.subr.mxu0 0.0
    %1384 = vmatpush1.msra.mxu0 0.0
    %1385 = vmatprep.subr.mxu0 0.0
    %1386 = vmatpush1.msra.mxu0 0.0
    %1387 = vmatprep.subr.mxu0 0.0
    %1388 = vmatpush1.msra.mxu0 0.0
    %1389 = vmatprep.subr.mxu0 0.0
    %1390 = vmatpush1.msra.mxu0 0.0
    %1391 = vmatprep.subr.mxu0 0.0
    %1392 = vmatpush1.msra.mxu0 0.0
    %1393 = vmatprep.subr.mxu0 0.0
    %1394 = vmatpush1.msra.mxu0 0.0
    %1395 = vmatprep.subr.mxu0 0.0
    %1396 = vmatpush1.msra.mxu0 0.0
    %1397 = vmatprep.subr.mxu0 0.0
    %1398 = vmatpush1.msra.mxu0 0.0
    %1399 = vmatprep.subr.mxu0 0.0
    %1400 = vmatpush1.msra.mxu0 0.0
    %1401 = vmatprep.subr.mxu0 0.0
    %1402 = vmatpush1.msra.mxu0 0.0
    %1403 = vmatprep.subr.mxu0 0.0
    %1404 = vmatpush1.msra.mxu0 0.0
    %1405 = vmatprep.subr.mxu0 0.0
    %1406 = vmatpush1.msra.mxu0 0.0
    %1407 = vmatprep.subr.mxu0 0.0
    %1408 = vmatpush1.msra.mxu0 0.0
    %1409 = vmatprep.subr.mxu0 0.0
    %1410 = vmatpush1.msra.mxu0 0.0
    %1411 = vmatprep.subr.mxu0 0.0
    %1412 = vmatpush1.msra.mxu0 0.0
    %1413 = vmatprep.subr.mxu0 0.0
    %1414 = vmatpush1.msra.mxu0 0.0
    %1415 = vmatprep.subr.mxu0 0.0
    %1416 = vmatpush1.msra.mxu0 0.0
    %1417 = vmatprep.subr.mxu0 0.0
    %1418 = vmatpush1.msra.mxu0 0.0
    %1419 = vmatprep.subr.mxu0 0.0
    %1420 = vmatpush1.msra.mxu0 0.0
    %1421 = vmatprep.mubr.f32.mxu0 0.0
    %v1422 = vand.u32 %v1079, 4294901760
    %1423 = vmatmul.mubr.f32.gmra.mrb[0].mxu0 %v1422
    %v1424 = vpop.f32.mrb[0].mxu0
    %v1425 = vadd.f32 %v1189, %v1424
    %v1426 = vpop.f32.mrb[0].mxu0
    %v1427 = vadd.f32 %v1191, %v1426
    %1428 = vmatprep.mubr.f32.mxu0 0.0
    %v1429 = vand.u32 %v1082, 4294901760
    %1430 = vmatmul.mubr.f32.gmra.mrb[0].mxu0 %v1429
    %v1431 = vpop.f32.mrb[0].mxu0
    %v1432 = vadd.f32 %v1200, %v1431
    %v1433 = vpop.f32.mrb[0].mxu0
    %v1434 = vadd.f32 %v1202, %v1433
    %1435 = vmatprep.mubr.f32.mxu0 0.0
    %v1436 = vand.u32 %v1085, 4294901760
    %1437 = vmatmul.mubr.f32.gmra.mrb[0].mxu0 %v1436
    %v1438 = vpop.f32.mrb[0].mxu0
    %v1439 = vadd.f32 %v1211, %v1438
    %v1440 = vpop.f32.mrb[0].mxu0
    %v1441 = vadd.f32 %v1213, %v1440
    %1442 = vmatprep.mubr.f32.mxu0 0.0
    %v1443 = vand.u32 %v1088, 4294901760
    %1444 = vmatmul.mubr.f32.gmra.mrb[0].mxu0 %v1443
    %v1445 = vpop.f32.mrb[0].mxu0
    %v1446 = vadd.f32 %v1222, %v1445
    %v1447 = vpop.f32.mrb[0].mxu0
    %v1448 = vadd.f32 %v1224, %v1447
    %1449 = vmatprep.mubr.f32.mxu0 0.0
    %v1450 = vand.u32 %v1091, 4294901760
    %1451 = vmatmul.mubr.f32.gmra.mrb[0].mxu0 %v1450
    %v1452 = vpop.f32.mrb[0].mxu0
    %v1453 = vadd.f32 %v1233, %v1452
    %v1454 = vpop.f32.mrb[0].mxu0
    %v1455 = vadd.f32 %v1235, %v1454
    %1456 = vdwg.mxu0
    %v1457 = vand.u32 %v185, 4294901760
    %v1458 = vsub.f32 %v185, %v1457
    %1459 = vmatprep.subr.mxu0 %v1458
    %v1460 = vand.u32 %v184, 4294901760
    %v1461 = vsub.f32 %v184, %v1460
    %1462 = vmatpush1.msra.mxu0 %v1461
    %v1463 = vand.u32 %v187, 4294901760
    %v1464 = vsub.f32 %v187, %v1463
    %1465 = vmatprep.subr.mxu0 %v1464
    %v1466 = vand.u32 %v186, 4294901760
    %v1467 = vsub.f32 %v186, %v1466
    %1468 = vmatpush1.msra.mxu0 %v1467
    %v1469 = vand.u32 %v189, 4294901760
    %v1470 = vsub.f32 %v189, %v1469
    %1471 = vmatprep.subr.mxu0 %v1470
    %v1472 = vand.u32 %v188, 4294901760
    %v1473 = vsub.f32 %v188, %v1472
    %1474 = vmatpush1.msra.mxu0 %v1473
    %v1475 = vand.u32 %v191, 4294901760
    %v1476 = vsub.f32 %v191, %v1475
    %1477 = vmatprep.subr.mxu0 %v1476
    %v1478 = vand.u32 %v190, 4294901760
    %v1479 = vsub.f32 %v190, %v1478
    %1480 = vmatpush1.msra.mxu0 %v1479
    %v1481 = vand.u32 %v193, 4294901760
    %v1482 = vsub.f32 %v193, %v1481
    %1483 = vmatprep.subr.mxu0 %v1482
    %v1484 = vand.u32 %v192, 4294901760
    %v1485 = vsub.f32 %v192, %v1484
    %1486 = vmatpush1.msra.mxu0 %v1485
    %v1487 = vand.u32 %v195, 4294901760
    %v1488 = vsub.f32 %v195, %v1487
    %1489 = vmatprep.subr.mxu0 %v1488
    %v1490 = vand.u32 %v194, 4294901760
    %v1491 = vsub.f32 %v194, %v1490
    %1492 = vmatpush1.msra.mxu0 %v1491
    %v1493 = vand.u32 %v197, 4294901760
    %v1494 = vsub.f32 %v197, %v1493
    %1495 = vmatprep.subr.mxu0 %v1494
    %v1496 = vand.u32 %v196, 4294901760
    %v1497 = vsub.f32 %v196, %v1496
    %1498 = vmatpush1.msra.mxu0 %v1497
    %v1499 = vand.u32 %v199, 4294901760
    %v1500 = vsub.f32 %v199, %v1499
    %1501 = vmatprep.subr.mxu0 %v1500
    %v1502 = vand.u32 %v198, 4294901760
    %v1503 = vsub.f32 %v198, %v1502
    %1504 = vmatpush1.msra.mxu0 %v1503
    %v1505 = vand.u32 %v201, 4294901760
    %v1506 = vsub.f32 %v201, %v1505
    %1507 = vmatprep.subr.mxu0 %v1506
    %v1508 = vand.u32 %v200, 4294901760
    %v1509 = vsub.f32 %v200, %v1508
    %1510 = vmatpush1.msra.mxu0 %v1509
    %v1511 = vand.u32 %v203, 4294901760
    %v1512 = vsub.f32 %v203, %v1511
    %1513 = vmatprep.subr.mxu0 %v1512
    %v1514 = vand.u32 %v202, 4294901760
    %v1515 = vsub.f32 %v202, %v1514
    %1516 = vmatpush1.msra.mxu0 %v1515
    %v1517 = vand.u32 %v205, 4294901760
    %v1518 = vsub.f32 %v205, %v1517
    %1519 = vmatprep.subr.mxu0 %v1518
    %v1520 = vand.u32 %v204, 4294901760
    %v1521 = vsub.f32 %v204, %v1520
    %1522 = vmatpush1.msra.mxu0 %v1521
    %v1523 = vand.u32 %v207, 4294901760
    %v1524 = vsub.f32 %v207, %v1523
    %1525 = vmatprep.subr.mxu0 %v1524
    %v1526 = vand.u32 %v206, 4294901760
    %v1527 = vsub.f32 %v206, %v1526
    %1528 = vmatpush1.msra.mxu0 %v1527
    %1529 = vmatprep.subr.mxu0 0.0
    %1530 = vmatpush1.msra.mxu0 0.0
    %1531 = vmatprep.subr.mxu0 0.0
    %1532 = vmatpush1.msra.mxu0 0.0
    %1533 = vmatprep.subr.mxu0 0.0
    %1534 = vmatpush1.msra.mxu0 0.0
    %1535 = vmatprep.subr.mxu0 0.0
    %1536 = vmatpush1.msra.mxu0 0.0
    %1537 = vmatprep.subr.mxu0 0.0
    %1538 = vmatpush1.msra.mxu0 0.0
    %1539 = vmatprep.subr.mxu0 0.0
    %1540 = vmatpush1.msra.mxu0 0.0
    %1541 = vmatprep.subr.mxu0 0.0
    %1542 = vmatpush1.msra.mxu0 0.0
    %1543 = vmatprep.subr.mxu0 0.0
    %1544 = vmatpush1.msra.mxu0 0.0
    %1545 = vmatprep.subr.mxu0 0.0
    %1546 = vmatpush1.msra.mxu0 0.0
    %1547 = vmatprep.subr.mxu0 0.0
    %1548 = vmatpush1.msra.mxu0 0.0
    %1549 = vmatprep.subr.mxu0 0.0
    %1550 = vmatpush1.msra.mxu0 0.0
    %1551 = vmatprep.subr.mxu0 0.0
    %1552 = vmatpush1.msra.mxu0 0.0
    %1553 = vmatprep.subr.mxu0 0.0
    %1554 = vmatpush1.msra.mxu0 0.0
    %1555 = vmatprep.subr.mxu0 0.0
    %1556 = vmatpush1.msra.mxu0 0.0
    %1557 = vmatprep.subr.mxu0 0.0
    %1558 = vmatpush1.msra.mxu0 0.0
    %1559 = vmatprep.subr.mxu0 0.0
    %1560 = vmatpush1.msra.mxu0 0.0
    %1561 = vmatprep.subr.mxu0 0.0
    %1562 = vmatpush1.msra.mxu0 0.0
    %1563 = vmatprep.subr.mxu0 0.0
    %1564 = vmatpush1.msra.mxu0 0.0
    %1565 = vmatprep.subr.mxu0 0.0
    %1566 = vmatpush1.msra.mxu0 0.0
    %1567 = vmatprep.subr.mxu0 0.0
    %1568 = vmatpush1.msra.mxu0 0.0
    %1569 = vmatprep.mubr.f32.mxu0 0.0
    %v1570 = vand.u32 %v1079, 4294901760
    %v1571 = vsub.f32 %v1079, %v1570
    %1572 = vmatmul.mubr.f32.gmra.mrb[0].mxu0 %v1571
    %v1573 = vpop.f32.mrb[0].mxu0
    %v1574 = vadd.f32 %v1425, %v1573
    %v1575 = vpop.f32.mrb[0].mxu0
    %v1576 = vadd.f32 %v1427, %v1575
    %1577 = vmatprep.mubr.f32.mxu0 0.0
    %v1578 = vand.u32 %v1082, 4294901760
    %v1579 = vsub.f32 %v1082, %v1578
    %1580 = vmatmul.mubr.f32.gmra.mrb[0].mxu0 %v1579
    %v1581 = vpop.f32.mrb[0].mxu0
    %v1582 = vadd.f32 %v1432, %v1581
    %v1583 = vpop.f32.mrb[0].mxu0
    %v1584 = vadd.f32 %v1434, %v1583
    %1585 = vmatprep.mubr.f32.mxu0 0.0
    %v1586 = vand.u32 %v1085, 4294901760
    %v1587 = vsub.f32 %v1085, %v1586
    %1588 = vmatmul.mubr.f32.gmra.mrb[0].mxu0 %v1587
    %v1589 = vpop.f32.mrb[0].mxu0
    %v1590 = vadd.f32 %v1439, %v1589
    %v1591 = vpop.f32.mrb[0].mxu0
    %v1592 = vadd.f32 %v1441, %v1591
    %1593 = vmatprep.mubr.f32.mxu0 0.0
    %v1594 = vand.u32 %v1088, 4294901760
    %v1595 = vsub.f32 %v1088, %v1594
    %1596 = vmatmul.mubr.f32.gmra.mrb[0].mxu0 %v1595
    %v1597 = vpop.f32.mrb[0].mxu0
    %v1598 = vadd.f32 %v1446, %v1597
    %v1599 = vpop.f32.mrb[0].mxu0
    %v1600 = vadd.f32 %v1448, %v1599
    %1601 = vmatprep.mubr.f32.mxu0 0.0
    %v1602 = vand.u32 %v1091, 4294901760
    %v1603 = vsub.f32 %v1091, %v1602
    %1604 = vmatmul.mubr.f32.gmra.mrb[0].mxu0 %v1603
    %v1605 = vpop.f32.mrb[0].mxu0
    %v1606 = vadd.f32 %v1453, %v1605
    %v1607 = vpop.f32.mrb[0].mxu0
    %v1608 = vadd.f32 %v1455, %v1607
    %1609 = vdwg.mxu0
    %v1610 = vand.u32 %v185, 4294901760
    %1611 = vmatprep.subr.mxu0 %v1610
    %v1612 = vand.u32 %v184, 4294901760
    %1613 = vmatpush1.msra.mxu0 %v1612
    %v1614 = vand.u32 %v187, 4294901760
    %1615 = vmatprep.subr.mxu0 %v1614
    %v1616 = vand.u32 %v186, 4294901760
    %1617 = vmatpush1.msra.mxu0 %v1616
    %v1618 = vand.u32 %v189, 4294901760
    %1619 = vmatprep.subr.mxu0 %v1618
    %v1620 = vand.u32 %v188, 4294901760
    %1621 = vmatpush1.msra.mxu0 %v1620
    %v1622 = vand.u32 %v191, 4294901760
    %1623 = vmatprep.subr.mxu0 %v1622
    %v1624 = vand.u32 %v190, 4294901760
    %1625 = vmatpush1.msra.mxu0 %v1624
    %v1626 = vand.u32 %v193, 4294901760
    %1627 = vmatprep.subr.mxu0 %v1626
    %v1628 = vand.u32 %v192, 4294901760
    %1629 = vmatpush1.msra.mxu0 %v1628
    %v1630 = vand.u32 %v195, 4294901760
    %1631 = vmatprep.subr.mxu0 %v1630
    %v1632 = vand.u32 %v194, 4294901760
    %1633 = vmatpush1.msra.mxu0 %v1632
    %v1634 = vand.u32 %v197, 4294901760
    %1635 = vmatprep.subr.mxu0 %v1634
    %v1636 = vand.u32 %v196, 4294901760
    %1637 = vmatpush1.msra.mxu0 %v1636
    %v1638 = vand.u32 %v199, 4294901760
    %1639 = vmatprep.subr.mxu0 %v1638
    %v1640 = vand.u32 %v198, 4294901760
    %1641 = vmatpush1.msra.mxu0 %v1640
    %v1642 = vand.u32 %v201, 4294901760
    %1643 = vmatprep.subr.mxu0 %v1642
    %v1644 = vand.u32 %v200, 4294901760
    %1645 = vmatpush1.msra.mxu0 %v1644
    %v1646 = vand.u32 %v203, 4294901760
    %1647 = vmatprep.subr.mxu0 %v1646
    %v1648 = vand.u32 %v202, 4294901760
    %1649 = vmatpush1.msra.mxu0 %v1648
    %v1650 = vand.u32 %v205, 4294901760
    %1651 = vmatprep.subr.mxu0 %v1650
    %v1652 = vand.u32 %v204, 4294901760
    %1653 = vmatpush1.msra.mxu0 %v1652
    %v1654 = vand.u32 %v207, 4294901760
    %1655 = vmatprep.subr.mxu0 %v1654
    %v1656 = vand.u32 %v206, 4294901760
    %1657 = vmatpush1.msra.mxu0 %v1656
    %1658 = vmatprep.subr.mxu0 0.0
    %1659 = vmatpush1.msra.mxu0 0.0
    %1660 = vmatprep.subr.mxu0 0.0
    %1661 = vmatpush1.msra.mxu0 0.0
    %1662 = vmatprep.subr.mxu0 0.0
    %1663 = vmatpush1.msra.mxu0 0.0
    %1664 = vmatprep.subr.mxu0 0.0
    %1665 = vmatpush1.msra.mxu0 0.0
    %1666 = vmatprep.subr.mxu0 0.0
    %1667 = vmatpush1.msra.mxu0 0.0
    %1668 = vmatprep.subr.mxu0 0.0
    %1669 = vmatpush1.msra.mxu0 0.0
    %1670 = vmatprep.subr.mxu0 0.0
    %1671 = vmatpush1.msra.mxu0 0.0
    %1672 = vmatprep.subr.mxu0 0.0
    %1673 = vmatpush1.msra.mxu0 0.0
    %1674 = vmatprep.subr.mxu0 0.0
    %1675 = vmatpush1.msra.mxu0 0.0
    %1676 = vmatprep.subr.mxu0 0.0
    %1677 = vmatpush1.msra.mxu0 0.0
    %1678 = vmatprep.subr.mxu0 0.0
    %1679 = vmatpush1.msra.mxu0 0.0
    %1680 = vmatprep.subr.mxu0 0.0
    %1681 = vmatpush1.msra.mxu0 0.0
    %1682 = vmatprep.subr.mxu0 0.0
    %1683 = vmatpush1.msra.mxu0 0.0
    %1684 = vmatprep.subr.mxu0 0.0
    %1685 = vmatpush1.msra.mxu0 0.0
    %1686 = vmatprep.subr.mxu0 0.0
    %1687 = vmatpush1.msra.mxu0 0.0
    %1688 = vmatprep.subr.mxu0 0.0
    %1689 = vmatpush1.msra.mxu0 0.0
    %1690 = vmatprep.subr.mxu0 0.0
    %1691 = vmatpush1.msra.mxu0 0.0
    %1692 = vmatprep.subr.mxu0 0.0
    %1693 = vmatpush1.msra.mxu0 0.0
    %1694 = vmatprep.subr.mxu0 0.0
    %1695 = vmatpush1.msra.mxu0 0.0
    %1696 = vmatprep.subr.mxu0 0.0
    %1697 = vmatpush1.msra.mxu0 0.0
    %1698 = vmatprep.mubr.f32.mxu0 0.0
    %v1699 = vand.u32 %v1079, 4294901760
    %v1700 = vsub.f32 %v1079, %v1699
    %v1701 = vand.u32 %v1700, 4294901760
    %1702 = vmatmul.mubr.f32.gmra.mrb[0].mxu0 %v1701
    %v1703 = vpop.f32.mrb[0].mxu0
    %v1704 = vadd.f32 %v1574, %v1703
    %v1705 = vpop.f32.mrb[0].mxu0
    %v1706 = vadd.f32 %v1576, %v1705
    %1707 = vmatprep.mubr.f32.mxu0 0.0
    %v1708 = vand.u32 %v1082, 4294901760
    %v1709 = vsub.f32 %v1082, %v1708
    %v1710 = vand.u32 %v1709, 4294901760
    %1711 = vmatmul.mubr.f32.gmra.mrb[0].mxu0 %v1710
    %v1712 = vpop.f32.mrb[0].mxu0
    %v1713 = vadd.f32 %v1582, %v1712
    %v1714 = vpop.f32.mrb[0].mxu0
    %v1715 = vadd.f32 %v1584, %v1714
    %1716 = vmatprep.mubr.f32.mxu0 0.0
    %v1717 = vand.u32 %v1085, 4294901760
    %v1718 = vsub.f32 %v1085, %v1717
    %v1719 = vand.u32 %v1718, 4294901760
    %1720 = vmatmul.mubr.f32.gmra.mrb[0].mxu0 %v1719
    %v1721 = vpop.f32.mrb[0].mxu0
    %v1722 = vadd.f32 %v1590, %v1721
    %v1723 = vpop.f32.mrb[0].mxu0
    %v1724 = vadd.f32 %v1592, %v1723
    %1725 = vmatprep.mubr.f32.mxu0 0.0
    %v1726 = vand.u32 %v1088, 4294901760
    %v1727 = vsub.f32 %v1088, %v1726
    %v1728 = vand.u32 %v1727, 4294901760
    %1729 = vmatmul.mubr.f32.gmra.mrb[0].mxu0 %v1728
    %v1730 = vpop.f32.mrb[0].mxu0
    %v1731 = vadd.f32 %v1598, %v1730
    %v1732 = vpop.f32.mrb[0].mxu0
    %v1733 = vadd.f32 %v1600, %v1732
    %1734 = vmatprep.mubr.f32.mxu0 0.0
    %v1735 = vand.u32 %v1091, 4294901760
    %v1736 = vsub.f32 %v1091, %v1735
    %v1737 = vand.u32 %v1736, 4294901760
    %1738 = vmatmul.mubr.f32.gmra.mrb[0].mxu0 %v1737
    %v1739 = vpop.f32.mrb[0].mxu0
    %v1740 = vadd.f32 %v1606, %v1739
    %v1741 = vpop.f32.mrb[0].mxu0
    %v1742 = vadd.f32 %v1608, %v1741
    %1743 = vdwg.mxu0
    %v1744 = vand.u32 %v185, 4294901760
    %v1745 = vsub.f32 %v185, %v1744
    %v1746 = vand.u32 %v1745, 4294901760
    %1747 = vmatprep.subr.mxu0 %v1746
    %v1748 = vand.u32 %v184, 4294901760
    %v1749 = vsub.f32 %v184, %v1748
    %v1750 = vand.u32 %v1749, 4294901760
    %1751 = vmatpush1.msra.mxu0 %v1750
    %v1752 = vand.u32 %v187, 4294901760
    %v1753 = vsub.f32 %v187, %v1752
    %v1754 = vand.u32 %v1753, 4294901760
    %1755 = vmatprep.subr.mxu0 %v1754
    %v1756 = vand.u32 %v186, 4294901760
    %v1757 = vsub.f32 %v186, %v1756
    %v1758 = vand.u32 %v1757, 4294901760
    %1759 = vmatpush1.msra.mxu0 %v1758
    %v1760 = vand.u32 %v189, 4294901760
    %v1761 = vsub.f32 %v189, %v1760
    %v1762 = vand.u32 %v1761, 4294901760
    %1763 = vmatprep.subr.mxu0 %v1762
    %v1764 = vand.u32 %v188, 4294901760
    %v1765 = vsub.f32 %v188, %v1764
    %v1766 = vand.u32 %v1765, 4294901760
    %1767 = vmatpush1.msra.mxu0 %v1766
    %v1768 = vand.u32 %v191, 4294901760
    %v1769 = vsub.f32 %v191, %v1768
    %v1770 = vand.u32 %v1769, 4294901760
    %1771 = vmatprep.subr.mxu0 %v1770
    %v1772 = vand.u32 %v190, 4294901760
    %v1773 = vsub.f32 %v190, %v1772
    %v1774 = vand.u32 %v1773, 4294901760
    %1775 = vmatpush1.msra.mxu0 %v1774
    %v1776 = vand.u32 %v193, 4294901760
    %v1777 = vsub.f32 %v193, %v1776
    %v1778 = vand.u32 %v1777, 4294901760
    %1779 = vmatprep.subr.mxu0 %v1778
    %v1780 = vand.u32 %v192, 4294901760
    %v1781 = vsub.f32 %v192, %v1780
    %v1782 = vand.u32 %v1781, 4294901760
    %1783 = vmatpush1.msra.mxu0 %v1782
    %v1784 = vand.u32 %v195, 4294901760
    %v1785 = vsub.f32 %v195, %v1784
    %v1786 = vand.u32 %v1785, 4294901760
    %1787 = vmatprep.subr.mxu0 %v1786
    %v1788 = vand.u32 %v194, 4294901760
    %v1789 = vsub.f32 %v194, %v1788
    %v1790 = vand.u32 %v1789, 4294901760
    %1791 = vmatpush1.msra.mxu0 %v1790
    %v1792 = vand.u32 %v197, 4294901760
    %v1793 = vsub.f32 %v197, %v1792
    %v1794 = vand.u32 %v1793, 4294901760
    %1795 = vmatprep.subr.mxu0 %v1794
    %v1796 = vand.u32 %v196, 4294901760
    %v1797 = vsub.f32 %v196, %v1796
    %v1798 = vand.u32 %v1797, 4294901760
    %1799 = vmatpush1.msra.mxu0 %v1798
    %v1800 = vand.u32 %v199, 4294901760
    %v1801 = vsub.f32 %v199, %v1800
    %v1802 = vand.u32 %v1801, 4294901760
    %1803 = vmatprep.subr.mxu0 %v1802
    %v1804 = vand.u32 %v198, 4294901760
    %v1805 = vsub.f32 %v198, %v1804
    %v1806 = vand.u32 %v1805, 4294901760
    %1807 = vmatpush1.msra.mxu0 %v1806
    %v1808 = vand.u32 %v201, 4294901760
    %v1809 = vsub.f32 %v201, %v1808
    %v1810 = vand.u32 %v1809, 4294901760
    %1811 = vmatprep.subr.mxu0 %v1810
    %v1812 = vand.u32 %v200, 4294901760
    %v1813 = vsub.f32 %v200, %v1812
    %v1814 = vand.u32 %v1813, 4294901760
    %1815 = vmatpush1.msra.mxu0 %v1814
    %v1816 = vand.u32 %v203, 4294901760
    %v1817 = vsub.f32 %v203, %v1816
    %v1818 = vand.u32 %v1817, 4294901760
    %1819 = vmatprep.subr.mxu0 %v1818
    %v1820 = vand.u32 %v202, 4294901760
    %v1821 = vsub.f32 %v202, %v1820
    %v1822 = vand.u32 %v1821, 4294901760
    %1823 = vmatpush1.msra.mxu0 %v1822
    %v1824 = vand.u32 %v205, 4294901760
    %v1825 = vsub.f32 %v205, %v1824
    %v1826 = vand.u32 %v1825, 4294901760
    %1827 = vmatprep.subr.mxu0 %v1826
    %v1828 = vand.u32 %v204, 4294901760
    %v1829 = vsub.f32 %v204, %v1828
    %v1830 = vand.u32 %v1829, 4294901760
    %1831 = vmatpush1.msra.mxu0 %v1830
    %v1832 = vand.u32 %v207, 4294901760
    %v1833 = vsub.f32 %v207, %v1832
    %v1834 = vand.u32 %v1833, 4294901760
    %1835 = vmatprep.subr.mxu0 %v1834
    %v1836 = vand.u32 %v206, 4294901760
    %v1837 = vsub.f32 %v206, %v1836
    %v1838 = vand.u32 %v1837, 4294901760
    %1839 = vmatpush1.msra.mxu0 %v1838
    %1840 = vmatprep.subr.mxu0 0.0
    %1841 = vmatpush1.msra.mxu0 0.0
    %1842 = vmatprep.subr.mxu0 0.0
    %1843 = vmatpush1.msra.mxu0 0.0
    %1844 = vmatprep.subr.mxu0 0.0
    %1845 = vmatpush1.msra.mxu0 0.0
    %1846 = vmatprep.subr.mxu0 0.0
    %1847 = vmatpush1.msra.mxu0 0.0
    %1848 = vmatprep.subr.mxu0 0.0
    %1849 = vmatpush1.msra.mxu0 0.0
    %1850 = vmatprep.subr.mxu0 0.0
    %1851 = vmatpush1.msra.mxu0 0.0
    %1852 = vmatprep.subr.mxu0 0.0
    %1853 = vmatpush1.msra.mxu0 0.0
    %1854 = vmatprep.subr.mxu0 0.0
    %1855 = vmatpush1.msra.mxu0 0.0
    %1856 = vmatprep.subr.mxu0 0.0
    %1857 = vmatpush1.msra.mxu0 0.0
    %1858 = vmatprep.subr.mxu0 0.0
    %1859 = vmatpush1.msra.mxu0 0.0
    %1860 = vmatprep.subr.mxu0 0.0
    %1861 = vmatpush1.msra.mxu0 0.0
    %1862 = vmatprep.subr.mxu0 0.0
    %1863 = vmatpush1.msra.mxu0 0.0
    %1864 = vmatprep.subr.mxu0 0.0
    %1865 = vmatpush1.msra.mxu0 0.0
    %1866 = vmatprep.subr.mxu0 0.0
    %1867 = vmatpush1.msra.mxu0 0.0
    %1868 = vmatprep.subr.mxu0 0.0
    %1869 = vmatpush1.msra.mxu0 0.0
    %1870 = vmatprep.subr.mxu0 0.0
    %1871 = vmatpush1.msra.mxu0 0.0
    %1872 = vmatprep.subr.mxu0 0.0
    %1873 = vmatpush1.msra.mxu0 0.0
    %1874 = vmatprep.subr.mxu0 0.0
    %1875 = vmatpush1.msra.mxu0 0.0
    %1876 = vmatprep.subr.mxu0 0.0
    %1877 = vmatpush1.msra.mxu0 0.0
    %1878 = vmatprep.subr.mxu0 0.0
    %1879 = vmatpush1.msra.mxu0 0.0
    %1880 = vmatprep.mubr.f32.mxu0 0.0
    %v1881 = vand.u32 %v1079, 4294901760
    %1882 = vmatmul.mubr.f32.gmra.mrb[0].mxu0 %v1881
    %v1883 = vpop.f32.mrb[0].mxu0
    %v1884 = vadd.f32 %v1704, %v1883
    %v1885 = vpop.f32.mrb[0].mxu0
    %v1886 = vadd.f32 %v1706, %v1885
    %1887 = vmatprep.mubr.f32.mxu0 0.0
    %v1888 = vand.u32 %v1082, 4294901760
    %1889 = vmatmul.mubr.f32.gmra.mrb[0].mxu0 %v1888
    %v1890 = vpop.f32.mrb[0].mxu0
    %v1891 = vadd.f32 %v1713, %v1890
    %v1892 = vpop.f32.mrb[0].mxu0
    %v1893 = vadd.f32 %v1715, %v1892
    %1894 = vmatprep.mubr.f32.mxu0 0.0
    %v1895 = vand.u32 %v1085, 4294901760
    %1896 = vmatmul.mubr.f32.gmra.mrb[0].mxu0 %v1895
    %v1897 = vpop.f32.mrb[0].mxu0
    %v1898 = vadd.f32 %v1722, %v1897
    %v1899 = vpop.f32.mrb[0].mxu0
    %v1900 = vadd.f32 %v1724, %v1899
    %1901 = vmatprep.mubr.f32.mxu0 0.0
    %v1902 = vand.u32 %v1088, 4294901760
    %1903 = vmatmul.mubr.f32.gmra.mrb[0].mxu0 %v1902
    %v1904 = vpop.f32.mrb[0].mxu0
    %v1905 = vadd.f32 %v1731, %v1904
    %v1906 = vpop.f32.mrb[0].mxu0
    %v1907 = vadd.f32 %v1733, %v1906
    %1908 = vmatprep.mubr.f32.mxu0 0.0
    %v1909 = vand.u32 %v1091, 4294901760
    %1910 = vmatmul.mubr.f32.gmra.mrb[0].mxu0 %v1909
    %v1911 = vpop.f32.mrb[0].mxu0
    %v1912 = vadd.f32 %v1740, %v1911
    %v1913 = vpop.f32.mrb[0].mxu0
    %v1914 = vadd.f32 %v1742, %v1913
    %1915 = vdwg.mxu0
    %v1916 = vand.u32 %v185, 4294901760
    %1917 = vmatprep.subr.mxu0 %v1916
    %v1918 = vand.u32 %v184, 4294901760
    %1919 = vmatpush1.msra.mxu0 %v1918
    %v1920 = vand.u32 %v187, 4294901760
    %1921 = vmatprep.subr.mxu0 %v1920
    %v1922 = vand.u32 %v186, 4294901760
    %1923 = vmatpush1.msra.mxu0 %v1922
    %v1924 = vand.u32 %v189, 4294901760
    %1925 = vmatprep.subr.mxu0 %v1924
    %v1926 = vand.u32 %v188, 4294901760
    %1927 = vmatpush1.msra.mxu0 %v1926
    %v1928 = vand.u32 %v191, 4294901760
    %1929 = vmatprep.subr.mxu0 %v1928
    %v1930 = vand.u32 %v190, 4294901760
    %1931 = vmatpush1.msra.mxu0 %v1930
    %v1932 = vand.u32 %v193, 4294901760
    %1933 = vmatprep.subr.mxu0 %v1932
    %v1934 = vand.u32 %v192, 4294901760
    %1935 = vmatpush1.msra.mxu0 %v1934
    %v1936 = vand.u32 %v195, 4294901760
    %1937 = vmatprep.subr.mxu0 %v1936
    %v1938 = vand.u32 %v194, 4294901760
    %1939 = vmatpush1.msra.mxu0 %v1938
    %v1940 = vand.u32 %v197, 4294901760
    %1941 = vmatprep.subr.mxu0 %v1940
    %v1942 = vand.u32 %v196, 4294901760
    %1943 = vmatpush1.msra.mxu0 %v1942
    %v1944 = vand.u32 %v199, 4294901760
    %1945 = vmatprep.subr.mxu0 %v1944
    %v1946 = vand.u32 %v198, 4294901760
    %1947 = vmatpush1.msra.mxu0 %v1946
    %v1948 = vand.u32 %v201, 4294901760
    %1949 = vmatprep.subr.mxu0 %v1948
    %v1950 = vand.u32 %v200, 4294901760
    %1951 = vmatpush1.msra.mxu0 %v1950
    %v1952 = vand.u32 %v203, 4294901760
    %1953 = vmatprep.subr.mxu0 %v1952
    %v1954 = vand.u32 %v202, 4294901760
    %1955 = vmatpush1.msra.mxu0 %v1954
    %v1956 = vand.u32 %v205, 4294901760
    %1957 = vmatprep.subr.mxu0 %v1956
    %v1958 = vand.u32 %v204, 4294901760
    %1959 = vmatpush1.msra.mxu0 %v1958
    %v1960 = vand.u32 %v207, 4294901760
    %1961 = vmatprep.subr.mxu0 %v1960
    %v1962 = vand.u32 %v206, 4294901760
    %1963 = vmatpush1.msra.mxu0 %v1962
    %1964 = vmatprep.subr.mxu0 0.0
    %1965 = vmatpush1.msra.mxu0 0.0
    %1966 = vmatprep.subr.mxu0 0.0
    %1967 = vmatpush1.msra.mxu0 0.0
    %1968 = vmatprep.subr.mxu0 0.0
    %1969 = vmatpush1.msra.mxu0 0.0
    %1970 = vmatprep.subr.mxu0 0.0
    %1971 = vmatpush1.msra.mxu0 0.0
    %1972 = vmatprep.subr.mxu0 0.0
    %1973 = vmatpush1.msra.mxu0 0.0
    %1974 = vmatprep.subr.mxu0 0.0
    %1975 = vmatpush1.msra.mxu0 0.0
    %1976 = vmatprep.subr.mxu0 0.0
    %1977 = vmatpush1.msra.mxu0 0.0
    %1978 = vmatprep.subr.mxu0 0.0
    %1979 = vmatpush1.msra.mxu0 0.0
    %1980 = vmatprep.subr.mxu0 0.0
    %1981 = vmatpush1.msra.mxu0 0.0
    %1982 = vmatprep.subr.mxu0 0.0
    %1983 = vmatpush1.msra.mxu0 0.0
    %1984 = vmatprep.subr.mxu0 0.0
    %1985 = vmatpush1.msra.mxu0 0.0
    %1986 = vmatprep.subr.mxu0 0.0
    %1987 = vmatpush1.msra.mxu0 0.0
    %1988 = vmatprep.subr.mxu0 0.0
    %1989 = vmatpush1.msra.mxu0 0.0
    %1990 = vmatprep.subr.mxu0 0.0
    %1991 = vmatpush1.msra.mxu0 0.0
    %1992 = vmatprep.subr.mxu0 0.0
    %1993 = vmatpush1.msra.mxu0 0.0
    %1994 = vmatprep.subr.mxu0 0.0
    %1995 = vmatpush1.msra.mxu0 0.0
    %1996 = vmatprep.subr.mxu0 0.0
    %1997 = vmatpush1.msra.mxu0 0.0
    %1998 = vmatprep.subr.mxu0 0.0
    %1999 = vmatpush1.msra.mxu0 0.0
    %2000 = vmatprep.subr.mxu0 0.0
    %2001 = vmatpush1.msra.mxu0 0.0
    %2002 = vmatprep.subr.mxu0 0.0
    %2003 = vmatpush1.msra.mxu0 0.0
    %2004 = vmatprep.mubr.f32.mxu0 0.0
    %v2005 = vand.u32 %v1079, 4294901760
    %2006 = vmatmul.mubr.f32.gmra.mrb[0].mxu0 %v2005
    %v2007 = vpop.f32.mrb[0].mxu0
    %v2008 = vadd.f32 %v1884, %v2007
    %v2009 = vpop.f32.mrb[0].mxu0
    %v2010 = vadd.f32 %v1886, %v2009
    %2011 = vmatprep.mubr.f32.mxu0 0.0
    %v2012 = vand.u32 %v1082, 4294901760
    %2013 = vmatmul.mubr.f32.gmra.mrb[0].mxu0 %v2012
    %v2014 = vpop.f32.mrb[0].mxu0
    %v2015 = vadd.f32 %v1891, %v2014
    %v2016 = vpop.f32.mrb[0].mxu0
    %v2017 = vadd.f32 %v1893, %v2016
    %2018 = vmatprep.mubr.f32.mxu0 0.0
    %v2019 = vand.u32 %v1085, 4294901760
    %2020 = vmatmul.mubr.f32.gmra.mrb[0].mxu0 %v2019
    %v2021 = vpop.f32.mrb[0].mxu0
    %v2022 = vadd.f32 %v1898, %v2021
    %v2023 = vpop.f32.mrb[0].mxu0
    %v2024 = vadd.f32 %v1900, %v2023
    %2025 = vmatprep.mubr.f32.mxu0 0.0
    %v2026 = vand.u32 %v1088, 4294901760
    %2027 = vmatmul.mubr.f32.gmra.mrb[0].mxu0 %v2026
    %v2028 = vpop.f32.mrb[0].mxu0
    %v2029 = vadd.f32 %v1905, %v2028
    %v2030 = vpop.f32.mrb[0].mxu0
    %v2031 = vadd.f32 %v1907, %v2030
    %2032 = vmatprep.mubr.f32.mxu0 0.0
    %v2033 = vand.u32 %v1091, 4294901760
    %2034 = vmatmul.mubr.f32.gmra.mrb[0].mxu0 %v2033
    %v2035 = vpop.f32.mrb[0].mxu0
    %v2036 = vadd.f32 %v1912, %v2035
    %v2037 = vpop.f32.mrb[0].mxu0
    %v2038 = vadd.f32 %v1914, %v2037
    %2039 = vdwg.mxu0
    %v2040 = vmul.f32 %v1040, %v2008
    %v2041 = vmul.f32 %v1042, %v2010
    %v2042 = vmul.f32 %v1047, %v2015
    %v2043 = vmul.f32 %v1049, %v2017
    %v2044 = vmul.f32 %v1054, %v2022
    %v2045 = vmul.f32 %v1056, %v2024
    %v2046 = vmul.f32 %v1061, %v2029
    %v2047 = vmul.f32 %v1063, %v2031
    %v2048 = vmul.f32 %v1068, %v2036
    %v2049 = vmul.f32 %v1070, %v2038
    %v2050 = vadd.f32 %v2040, %v2042
    %v2051 = vadd.f32 %v2050, %v2044
    %v2052 = vadd.f32 %v2051, %v2046
    %v2053 = vadd.f32 %v2052, %v2048
    %v2054 = vrot.slane %v2053, 4
    %v2055 = vadd.f32 %v2053, %v2054
    %v2056 = vrot.slane %v2055, 2
    %v2057 = vadd.f32 %v2055, %v2056
    %v2058 = vrot.slane %v2057, 1
    %v2059 = vadd.f32 %v2057, %v2058
    %v2060 = vadd.f32 %v2041, %v2043
    %v2061 = vadd.f32 %v2060, %v2045
    %v2062 = vadd.f32 %v2061, %v2047
    %v2063 = vadd.f32 %v2062, %v2049
    %v2064 = vrot.slane %v2063, 4
    %v2065 = vadd.f32 %v2063, %v2064
    %v2066 = vrot.slane %v2065, 2
    %v2067 = vadd.f32 %v2065, %v2066
    %v2068 = vrot.slane %v2067, 1
    %v2069 = vadd.f32 %v2067, %v2068
    %v2072 = vcombine.low %v2059, %v2069
    %v2074 = vunpack.c.l.s4 1966171168
    %v2075 = vunpack.c.0.s8 %v2074
    %v2076 = vlaneseq
    %v2077 = vshrl.u32 %v2076, 7
    %v2078 = vsub.s32 %v2075, %v2077
    %v2079 = vrot.slane %v2072, %v2078
    %v2081 = vunpack.c.l.s4 1966171168
    %v2082 = vunpack.c.0.s8 %v2081
    %v2083 = vlaneseq
    %v2084 = vshrl.u32 %v2083, 7
    %v2085 = vsub.s32 %v2082, %v2084
    %v2086 = vrot.slane %v2079, %v2085
    %v2088 = vlaneseq
    %vm2089 = vcmp.ge.s32.totalorder %v2088, 0
    %vm2090 = vcmp.lt.s32.totalorder %v2088, 256
    %vm2091 = vmand %vm2089, %vm2090
    %2092 = vst.msk [vmem:[#allocation8] sm:$0x3] %vm2091, %v2086
    // Predicated region
    $region30: #{tpu_custom_call.1} parent=1 // pred_check
      _
    $region31: #{tpu_custom_call.1} parent=1 // pred_check_branch
      %2094 = sbr.rel (0) target = $region33
    $region32: #{tpu_custom_call.1} parent=1 // pred_region
      %s2096 = ssub.s32 32, 32
      %2097 = vsyncadd [#allocation4], %s2096
      %s2099 = sshll.u32 [#allocation8], 4
      %s2100 = int_to_ptr.vmem [resolvable:$true] %s2099
      %2102 = dma.vmem_to_hbm [thread:$0]  %s2100, 32, %s4, [#allocation4]
    $region33: #{tpu_custom_call.1} parent=1 // pred_fallthru
      _
    // Predicated region
    $region34: #{tpu_custom_call.1} parent=1 // pred_check
      _
    $region35: #{tpu_custom_call.1} parent=1 // pred_check_branch
      %2104 = sbr.rel (0) target = $region37
    $region36: #{tpu_custom_call.1} parent=1 // pred_region
      %2105 = dma.done [#allocation4], 32
    $region37: #{tpu_custom_call.1} parent=1 // pred_fallthru
      _
    %2106 = vsyncpa [#allocation3], 1
    %2107 = vsyncpa [#allocation6], 1
    %2108 = vsyncpa [#allocation4], 1

</llo_original>
